<compile_context>
chip_gen: v5e
topology: v5e:2x2
jax: 0.10.0
libtpu: 0.0.40
codegen_flags: <defaults>
</compile_context>

<pallas_src>
import functools

import jax
import jax.numpy as jnp
from jax import lax
from jax.experimental import pallas as pl
from jax.experimental.pallas import tpu as pltpu

EPS = 1e-5
_VMEM_LIMIT = 32 * 1024 * 1024  # safe on v5e / v6e / v7x


def _cparams(dim_sem):
    return pltpu.CompilerParams(dimension_semantics=dim_sem,
                                vmem_limit_bytes=_VMEM_LIMIT)


# ----------------------------------------------------------------------------
# Conv 3x3 (+ BN batch statistics) kernel
# ----------------------------------------------------------------------------
def _conv3x3_kernel(x_ref, w_ref, y_ref, stat_ref, *, kwf, wo):
    # x_ref:    (1, 1, wo + kwf - 1, cin_eff) bf16 -- one padded, W-folded input row
    # w_ref:    (kh, kwf, cin_eff, cout)      bf16 -- full folded weights (VMEM-resident)
    # y_ref:    (1, 1, wo, cout)              f32  -- output row, accumulated over ki
    # stat_ref: (1, 1, 2,  cout)              f32  -- [sum, sum-of-squares] of this row
    ki = pl.program_id(2)
    cout = y_ref.shape[-1]

    @pl.when(ki == 0)
    def _init():
        y_ref[...] = jnp.zeros_like(y_ref)

    w_row = w_ref[ki]                                   # (kwf, cin_eff, cout)
    acc = jnp.zeros((wo, cout), jnp.float32)
    for kj in range(kwf):                               # static unrolled tap loop
        win = x_ref[0, 0, pl.ds(kj, wo), :]             # (wo, cin_eff) bf16
        acc = acc + jnp.dot(win, w_row[kj],
                            preferred_element_type=jnp.float32)
    y_ref[0, 0] += acc

    @pl.when(ki == pl.num_programs(2) - 1)
    def _stats():
        y = y_ref[0, 0]
        stat_ref[0, 0] = jnp.concatenate(
            [jnp.sum(y, axis=0, keepdims=True),
             jnp.sum(y * y, axis=0, keepdims=True)], axis=0)


def conv3x3_bn_stats(x_nhwc, w_packed, stride):
    """3x3 conv (padding=1, given stride), no bias, + per-row BN statistics.

    x_nhwc:   (N, H, W, Cin)      (cast to bf16 internally)
    w_packed: (3, 3, Cin, Cout)   bf16
    returns:  y     (N, Ho, Wo, Cout) f32
              stats (N, Ho, 2,  Cout) f32   (row sums / row sums of squares)
    """
    N, H, W, Cin = x_nhwc.shape
    kh, kw, _, Cout = w_packed.shape
    pad, s = 1, stride
    Ho = (H + 2 * pad - kh) // s + 1
    Wo = (W + 2 * pad - kw) // s + 1

    # ---- spatial zero padding + fold the W-stride into the channel axis ----
    kwf = (kw - 1) // s + 1          # folded kernel width (3 for s=1, 2 for s=2)
    cin_eff = s * Cin
    wcols = Wo + kwf - 1             # folded W extent the kernel needs
    wp_needed = s * wcols
    extra_w = max(0, wp_needed - (W + 2 * pad))
    xp = jnp.pad(x_nhwc.astype(jnp.bfloat16),
                 ((0, 0), (pad, pad), (pad, pad + extra_w), (0, 0)))
    xp = xp[:, :, :wp_needed, :]                                   # free if exact
    x_fold = xp.reshape(N, H + 2 * pad, wcols, cin_eff)            # free reshape

    # Same fold on the weights: pad kw -> kwf*s, merge the s sub-taps into Cin.
    w_fold = jnp.pad(w_packed, ((0, 0), (0, kwf * s - kw), (0, 0), (0, 0)))
    w_fold = w_fold.reshape(kh, kwf, cin_eff, Cout)

    kernel = functools.partial(_conv3x3_kernel, kwf=kwf, wo=Wo)
    y, stats = pl.pallas_call(
        kernel,
        grid=(N, Ho, kh),
        in_specs=[
            pl.BlockSpec((1, 1, wcols, cin_eff),
                         lambda n, ho, ki: (n, ho * s + ki, 0, 0)),
            pl.BlockSpec((kh, kwf, cin_eff, Cout),
                         lambda n, ho, ki: (0, 0, 0, 0)),
        ],
        out_specs=[
            pl.BlockSpec((1, 1, Wo, Cout), lambda n, ho, ki: (n, ho, 0, 0)),
            pl.BlockSpec((1, 1, 2, Cout), lambda n, ho, ki: (n, ho, 0, 0)),
        ],
        out_shape=[
            jax.ShapeDtypeStruct((N, Ho, Wo, Cout), jnp.float32),
            jax.ShapeDtypeStruct((N, Ho, 2, Cout), jnp.float32),
        ],
        compiler_params=_cparams(("parallel", "parallel", "arbitrary")),
    )(x_fold, w_fold)
    return y, stats


# ----------------------------------------------------------------------------
# Tiled BN-apply (+ residual add) + ReLU kernels (lane axis = Wo*Cout)
# ----------------------------------------------------------------------------
def _scale_shift_relu_kernel(y_ref, scale_ref, shift_ref, o_ref):
    o_ref[...] = jnp.maximum(
        y_ref[...] * scale_ref[...] + shift_ref[...], 0.0).astype(o_ref.dtype)


def _scale_shift_add_relu_kernel(y_ref, res_ref, scale_ref, shift_ref, o_ref):
    o_ref[...] = jnp.maximum(
        y_ref[...] * scale_ref[...] + shift_ref[...] + res_ref[...], 0.0
    ).astype(o_ref.dtype)


def bn_act(y2d, scale_row, shift_row, residual=None, out_dtype=jnp.float32,
           block_rows=256):
    """Tiled relu(y * scale + shift [+ residual]) over a (M, L) layout."""
    M, L = y2d.shape
    tm = M if M <= block_rows else block_rows
    row_spec = pl.BlockSpec((tm, L), lambda i: (i, 0))
    vec_spec = pl.BlockSpec((1, L), lambda i: (0, 0))
    if residual is None:
        kernel = _scale_shift_relu_kernel
        operands = (y2d, scale_row, shift_row)
        in_specs = [row_spec, vec_spec, vec_spec]
    else:
        kernel = _scale_shift_add_relu_kernel
        operands = (y2d, residual, scale_row, shift_row)
        in_specs = [row_spec, row_spec, vec_spec, vec_spec]
    return pl.pallas_call(
        kernel,
        grid=(pl.cdiv(M, tm),),
        in_specs=in_specs,
        out_specs=row_spec,
        out_shape=jax.ShapeDtypeStruct((M, L), out_dtype),
        compiler_params=_cparams(("parallel",)),
    )(*operands)


def _bn_scale_shift(stats, gamma, beta, count, wo):
    """Training-mode BN coefficients from fused conv statistics, tiled to the
    lane-dense (1, wo*C) layout used by the elementwise pass."""
    tot = jnp.sum(stats, axis=(0, 1))            # (2, C)
    mean = tot[0] / count
    var = tot[1] / count - mean * mean           # biased variance
    scale = gamma * lax.rsqrt(var + EPS)
    shift = beta - mean * scale
    c = scale.shape[0]
    return (jnp.tile(scale, wo).reshape(1, wo * c),
            jnp.tile(shift, wo).reshape(1, wo * c))


# ----------------------------------------------------------------------------
# 1x1 shortcut conv = tiled matmul + bias
# ----------------------------------------------------------------------------
def _matmul_bias_kernel(a_ref, b_ref, bias_ref, o_ref):
    o_ref[...] = (jnp.dot(a_ref[...], b_ref[...],
                          preferred_element_type=jnp.float32)
                  + bias_ref[...]).astype(o_ref.dtype)


def conv1x1(x_nhwc, w_cin_cout, bias_row, stride, block_rows=512):
    xs = x_nhwc[:, ::stride, ::stride, :]
    N, Ho, Wo, Cin = xs.shape
    Cout = w_cin_cout.shape[1]
    M = N * Ho * Wo
    a = xs.reshape(M, Cin).astype(jnp.bfloat16)
    tm = M if M <= block_rows else block_rows
    return pl.pallas_call(
        _matmul_bias_kernel,
        grid=(pl.cdiv(M, tm),),
        in_specs=[pl.BlockSpec((tm, Cin), lambda i: (i, 0)),
                  pl.BlockSpec((Cin, Cout), lambda i: (0, 0)),
                  pl.BlockSpec((1, Cout), lambda i: (0, 0))],
        out_specs=pl.BlockSpec((tm, Cout), lambda i: (i, 0)),
        out_shape=jax.ShapeDtypeStruct((M, Cout), jnp.float32),
        compiler_params=_cparams(("parallel",)),
    )(a, w_cin_cout, bias_row)


# ----------------------------------------------------------------------------
# Parameter repacking (done once, outside the jitted forward)
# ----------------------------------------------------------------------------
def prepare_params(p):
    """torch-layout params -> bf16 matmul layout.  b1/b2 are dropped on purpose:
    a per-channel bias directly followed by training-mode BN cancels exactly."""
    def conv_w(w):  # (Cout, Cin, kh, kw) -> (kh, kw, Cin, Cout)
        return jnp.transpose(w, (2, 3, 1, 0)).astype(jnp.bfloat16)

    packed = {
        "w1": conv_w(p["w1"]),
        "w2": conv_w(p["w2"]),
        "gamma1": p["gamma1"].astype(jnp.float32),
        "beta1": p["beta1"].astype(jnp.float32),
        "gamma2": p["gamma2"].astype(jnp.float32),
        "beta2": p["beta2"].astype(jnp.float32),
    }
    if "w3" in p:
        cout, cin = p["w3"].shape[:2]
        packed["w3"] = jnp.transpose(p["w3"].reshape(cout, cin), (1, 0)).astype(jnp.bfloat16)
        packed["b3"] = p["b3"].reshape(1, cout).astype(jnp.float32)
    return packed


# ----------------------------------------------------------------------------
# Residual forward (Pallas path)
# ----------------------------------------------------------------------------
@functools.partial(jax.jit, static_argnames=("stride", "use_1x1conv"))
def residual_forward(x_nchw, packed, stride, use_1x1conv):
    x = jnp.transpose(x_nchw, (0, 2, 3, 1)).astype(jnp.float32)   # NHWC
    N, H, W, Cin = x.shape
    Cout = packed["w1"].shape[-1]

    # conv1 (3x3, pad=1, stride) with fused BN statistics -> bn1 -> relu
    y1_raw, st1 = conv3x3_bn_stats(x, packed["w1"], stride)
    _, Ho, Wo, _ = y1_raw.shape
    scale1, shift1 = _bn_scale_shift(st1, packed["gamma1"], packed["beta1"],
                                     N * Ho * Wo, Wo)
    y1 = bn_act(y1_raw.reshape(N * Ho, Wo * Cout), scale1, shift1,
                out_dtype=jnp.bfloat16)
    y1_img = y1.reshape(N, Ho, Wo, Cout)

    # conv2 (3x3, pad=1, stride=1) with fused BN statistics
    y2_raw, st2 = conv3x3_bn_stats(y1_img, packed["w2"], 1)
    scale2, shift2 = _bn_scale_shift(st2, packed["gamma2"], packed["beta2"],
                                     N * Ho * Wo, Wo)

    # shortcut
    if use_1x1conv:
        xs = conv1x1(x, packed["w3"], packed["b3"], stride)       # (M, Cout) f32
    else:
        if stride != 1 or Cin != Cout:
            raise ValueError("identity shortcut requires stride==1 and Cin==Cout")
        xs = x.reshape(N * H * W, Cin)

    # bn2 + residual add + relu (fused, tiled, lane-dense)
    out = bn_act(y2_raw.reshape(N * Ho, Wo * Cout), scale2, shift2,
                 residual=xs.reshape(N * Ho, Wo * Cout),
                 out_dtype=jnp.float32)
    return jnp.transpose(out.reshape(N, Ho, Wo, Cout), (0, 3, 1, 2))   # NCHW


# ----------------------------------------------------------------------------
# Pure-JAX reference (mirrors the PyTorch module, training-mode BN, f32)
# ----------------------------------------------------------------------------
def residual_reference(x, params, stride, use_1x1conv):
    def conv(x, w, b, s, p):
        y = lax.conv_general_dilated(
            x, w, (s, s), ((p, p), (p, p)),
            dimension_numbers=("NCHW", "OIHW", "NCHW"))
        return y + b.reshape(1, -1, 1, 1)

    def bn(y, gamma, beta):
        mean = jnp.mean(y, axis=(0, 2, 3), keepdims=True)
        var = jnp.mean((y - mean) ** 2, axis=(0, 2, 3), keepdims=True)
        yh = (y - mean) * lax.rsqrt(var + EPS)
        return yh * gamma.reshape(1, -1, 1, 1) + beta.reshape(1, -1, 1, 1)

    y = jax.nn.relu(bn(conv(x, params["w1"], params["b1"], stride, 1),
                       params["gamma1"], params["beta1"]))
    y = bn(conv(y, params["w2"], params["b2"], 1, 1),
           params["gamma2"], params["beta2"])
    if use_1x1conv:
        x = conv(x, params["w3"], params["b3"], stride, 0)
    return jax.nn.relu(y + x)


# ----------------------------------------------------------------------------
if __name__ == "__main__":
    in_channels, out_channels = 4, 8
    use_1x1conv, stride = True, 2
    N, H, W = 2, 16, 16

    key = jax.random.PRNGKey(0)
    ks = jax.random.split(key, 11)
    params = {
        "w1": 0.1 * jax.random.normal(ks[0], (out_channels, in_channels, 3, 3), jnp.float32),
        "b1": 0.1 * jax.random.normal(ks[1], (out_channels,), jnp.float32),
        "w2": 0.1 * jax.random.normal(ks[2], (out_channels, out_channels, 3, 3), jnp.float32),
        "b2": 0.1 * jax.random.normal(ks[3], (out_channels,), jnp.float32),
        "w3": 0.1 * jax.random.normal(ks[4], (out_channels, in_channels, 1, 1), jnp.float32),
        "b3": 0.1 * jax.random.normal(ks[5], (out_channels,), jnp.float32),
        "gamma1": 1.0 + 0.1 * jax.random.normal(ks[6], (out_channels,), jnp.float32),
        "beta1": 0.1 * jax.random.normal(ks[7], (out_channels,), jnp.float32),
        "gamma2": 1.0 + 0.1 * jax.random.normal(ks[8], (out_channels,), jnp.float32),
        "beta2": 0.1 * jax.random.normal(ks[9], (out_channels,), jnp.float32),
    }
    x = jax.random.normal(ks[10], (N, in_channels, H, W), jnp.float32)

    packed = prepare_params(params)           # one-time repack to bf16 layout
    out = residual_forward(x, packed, stride, use_1x1conv)
    out = jax.block_until_ready(out)

    ref = residual_reference(x, params, stride, use_1x1conv)
    assert out.shape == ref.shape == (N, out_channels, H // stride, W // stride), out.shape
    # bf16 matmul operands (f32 accumulation) -> relaxed tolerance vs f32 reference
    max_err = float(jnp.max(jnp.abs(out - ref)))
    assert jnp.allclose(out, ref, atol=5e-2, rtol=5e-2), max_err

    print("KERNEL_OK")
</pallas_src>

<mosaic_0001>
module attributes {stable_mosaic.version = 11 : i64} {
  func.func @_matmul_bias_kernel(%arg0: i32, %arg1: memref<128x4xbf16, #tpu.memory_space<vmem>>, %arg2: memref<4x8xbf16, #tpu.memory_space<vmem>>, %arg3: memref<1x8xf32, #tpu.memory_space<vmem>>, %arg4: memref<128x8xf32, #tpu.memory_space<vmem>>) attributes {dimension_semantics = [#tpu.dimension_semantics<parallel>], iteration_bounds = array<i64: 1>, scalar_prefetch = 0 : i64, scratch_operands = 0 : i64, tpu.core_type = #tpu.core_type<tc>, window_params = [{transform_indices = @transform_0, window_bounds = array<i64: 128, 4>}, {pipeline_mode = #tpu.pipeline_mode<synchronous>, transform_indices = @transform_1, window_bounds = array<i64: 4, 8>}, {pipeline_mode = #tpu.pipeline_mode<synchronous>, transform_indices = @transform_2, window_bounds = array<i64: 1, 8>}, {transform_indices = @transform_3, window_bounds = array<i64: 128, 8>}]} {
    %c0 = arith.constant 0 : index
    %c0_0 = arith.constant 0 : index
    %0 = vector.load %arg1[%c0, %c0_0] : memref<128x4xbf16, #tpu.memory_space<vmem>>, vector<128x4xbf16>
    %c0_1 = arith.constant 0 : index
    %c0_2 = arith.constant 0 : index
    %1 = vector.load %arg2[%c0_1, %c0_2] : memref<4x8xbf16, #tpu.memory_space<vmem>>, vector<4x8xbf16>
    %cst = arith.constant dense<0.000000e+00> : vector<128x8xf32>
    %2 = tpu.matmul %0, %1, %cst {dimension_numbers = #tpu.dot_dimension_numbers<[1], [0], [0], [1], [0, 0, 1, 1], [], []>} : vector<128x4xbf16>, vector<4x8xbf16>, vector<128x8xf32> -> vector<128x8xf32>
    %c0_3 = arith.constant 0 : index
    %c0_4 = arith.constant 0 : index
    %3 = vector.load %arg3[%c0_3, %c0_4] : memref<1x8xf32, #tpu.memory_space<vmem>>, vector<1x8xf32>
    %4 = vector.broadcast %3 : vector<1x8xf32> to vector<128x8xf32>
    %5 = arith.addf %2, %4 : vector<128x8xf32>
    %c0_5 = arith.constant 0 : index
    %c0_6 = arith.constant 0 : index
    %6 = vector.load %arg4[%c0_5, %c0_6] : memref<128x8xf32, #tpu.memory_space<vmem>>, vector<128x8xf32>
    tpu.vector_store %arg4[%c0_5, %c0_6], %5 {strides = array<i32>} : memref<128x8xf32, #tpu.memory_space<vmem>>, vector<128x8xf32>,
    return
  }
  func.func @transform_0(%arg0: i32) -> (i32, i32) {
    %c0_i32 = arith.constant 0 : i32
    %c0_i32_0 = arith.constant 0 : i32
    return %arg0, %c0_i32 : i32, i32
  }
  func.func @transform_1(%arg0: i32) -> (i32, i32) {
    %c0_i32 = arith.constant 0 : i32
    %c0_i32_0 = arith.constant 0 : i32
    %c0_i32_1 = arith.constant 0 : i32
    return %c0_i32, %c0_i32_0 : i32, i32
  }
  func.func @transform_2(%arg0: i32) -> (i32, i32) {
    %c0_i32 = arith.constant 0 : i32
    %c0_i32_0 = arith.constant 0 : i32
    %c0_i32_1 = arith.constant 0 : i32
    return %c0_i32, %c0_i32_0 : i32, i32
  }
  func.func @transform_3(%arg0: i32) -> (i32, i32) {
    %c0_i32 = arith.constant 0 : i32
    %c0_i32_0 = arith.constant 0 : i32
    return %arg0, %c0_i32 : i32, i32
  }
}

module attributes {stable_mosaic.version = 11 : i64} {
  func.func @_conv3x3_kernel(%arg0: i32, %arg1: i32, %arg2: i32, %arg3: memref<1x1x9x8xbf16, #tpu.memory_space<vmem>>, %arg4: memref<3x2x8x8xbf16, #tpu.memory_space<vmem>>, %arg5: memref<1x1x8x8xf32, #tpu.memory_space<vmem>>, %arg6: memref<1x1x2x8xf32, #tpu.memory_space<vmem>>) attributes {dimension_semantics = [#tpu.dimension_semantics<parallel>, #tpu.dimension_semantics<parallel>, #tpu.dimension_semantics<arbitrary>], iteration_bounds = array<i64: 2, 8, 3>, scalar_prefetch = 0 : i64, scratch_operands = 0 : i64, tpu.core_type = #tpu.core_type<tc>, window_params = [{transform_indices = @transform_0, window_bounds = array<i64: 1, 1, 9, 8>}, {pipeline_mode = #tpu.pipeline_mode<synchronous>, transform_indices = @transform_1, window_bounds = array<i64: 3, 2, 8, 8>}, {transform_indices = @transform_2, window_bounds = array<i64: 1, 1, 8, 8>}, {transform_indices = @transform_3, window_bounds = array<i64: 1, 1, 2, 8>}]} {
    %c0_i32 = arith.constant 0 : i32
    %0 = arith.cmpi eq, %arg2, %c0_i32 : i32
    %1 = arith.extui %0 : i1 to i32
    %c0_i32_0 = arith.constant 0 : i32
    %2 = arith.cmpi ne, %1, %c0_i32_0 : i32
    scf.if %2 {
      %cst_21 = arith.constant 0.000000e+00 : f32
      %28 = vector.broadcast %cst_21 : f32 to vector<1x1x8x8xf32>
      %c0_22 = arith.constant 0 : index
      %c0_23 = arith.constant 0 : index
      %c0_24 = arith.constant 0 : index
      %c0_25 = arith.constant 0 : index
      %29 = vector.load %arg5[%c0_22, %c0_23, %c0_24, %c0_25] : memref<1x1x8x8xf32, #tpu.memory_space<vmem>>, vector<1x1x8x8xf32>
      tpu.vector_store %arg5[%c0_22, %c0_23, %c0_24, %c0_25], %28 {strides = array<i32>} : memref<1x1x8x8xf32, #tpu.memory_space<vmem>>, vector<1x1x8x8xf32>,
    } else {
    }
    %3 = arith.index_cast %arg2 : i32 to index
    %c0 = arith.constant 0 : index
    %c0_1 = arith.constant 0 : index
    %c0_2 = arith.constant 0 : index
    %4 = vector.load %arg4[%3, %c0, %c0_1, %c0_2] : memref<3x2x8x8xbf16, #tpu.memory_space<vmem>>, vector<1x2x8x8xbf16>
    %5 = vector.shape_cast %4 : vector<1x2x8x8xbf16> to vector<2x8x8xbf16>
    %cst = arith.constant 0.000000e+00 : f32
    %6 = vector.broadcast %cst : f32 to vector<8x8xf32>
    %c0_3 = arith.constant 0 : index
    %c0_4 = arith.constant 0 : index
    %c0_5 = arith.constant 0 : index
    %c0_6 = arith.constant 0 : index
    %7 = vector.load %arg3[%c0_3, %c0_4, %c0_5, %c0_6] : memref<1x1x9x8xbf16, #tpu.memory_space<vmem>>, vector<1x1x8x8xbf16>
    %8 = vector.shape_cast %7 : vector<1x1x8x8xbf16> to vector<8x8xbf16>
    %9 = vector.extract_strided_slice %5 {offsets = [0, 0, 0], sizes = [1, 8, 8], strides = [1, 1, 1]} : vector<2x8x8xbf16> to vector<1x8x8xbf16>
    %10 = vector.shape_cast %9 : vector<1x8x8xbf16> to vector<8x8xbf16>
    %cst_7 = arith.constant dense<0.000000e+00> : vector<8x8xf32>
    %11 = tpu.matmul %8, %10, %cst_7 {dimension_numbers = #tpu.dot_dimension_numbers<[1], [0], [0], [1], [0, 0, 1, 1], [], []>} : vector<8x8xbf16>, vector<8x8xbf16>, vector<8x8xf32> -> vector<8x8xf32>
    %12 = arith.addf %6, %11 : vector<8x8xf32>
    %c0_8 = arith.constant 0 : index
    %c0_9 = arith.constant 0 : index
    %c1 = arith.constant 1 : index
    %c0_10 = arith.constant 0 : index
    %13 = vector.load %arg3[%c0_8, %c0_9, %c1, %c0_10] : memref<1x1x9x8xbf16, #tpu.memory_space<vmem>>, vector<1x1x8x8xbf16>
    %14 = vector.shape_cast %13 : vector<1x1x8x8xbf16> to vector<8x8xbf16>
    %15 = vector.extract_strided_slice %5 {offsets = [1, 0, 0], sizes = [1, 8, 8], strides = [1, 1, 1]} : vector<2x8x8xbf16> to vector<1x8x8xbf16>
    %16 = vector.shape_cast %15 : vector<1x8x8xbf16> to vector<8x8xbf16>
    %cst_11 = arith.constant dense<0.000000e+00> : vector<8x8xf32>
    %17 = tpu.matmul %14, %16, %cst_11 {dimension_numbers = #tpu.dot_dimension_numbers<[1], [0], [0], [1], [0, 0, 1, 1], [], []>} : vector<8x8xbf16>, vector<8x8xbf16>, vector<8x8xf32> -> vector<8x8xf32>
    %18 = arith.addf %12, %17 : vector<8x8xf32>
    %c0_12 = arith.constant 0 : index
    %c0_13 = arith.constant 0 : index
    %c0_14 = arith.constant 0 : index
    %c0_15 = arith.constant 0 : index
    %19 = vector.load %arg5[%c0_12, %c0_13, %c0_14, %c0_15] : memref<1x1x8x8xf32, #tpu.memory_space<vmem>>, vector<1x1x8x8xf32>
    %20 = vector.shape_cast %19 : vector<1x1x8x8xf32> to vector<8x8xf32>
    %21 = arith.addf %20, %18 : vector<8x8xf32>
    %c0_16 = arith.constant 0 : index
    %c0_17 = arith.constant 0 : index
    %c0_18 = arith.constant 0 : index
    %c0_19 = arith.constant 0 : index
    %22 = vector.load %arg5[%c0_16, %c0_17, %c0_18, %c0_19] : memref<1x1x8x8xf32, #tpu.memory_space<vmem>>, vector<1x1x8x8xf32>
    %23 = vector.shape_cast %22 : vector<1x1x8x8xf32> to vector<8x8xf32>
    %24 = vector.shape_cast %21 : vector<8x8xf32> to vector<1x1x8x8xf32>
    tpu.vector_store %arg5[%c0_16, %c0_17, %c0_18, %c0_19], %24 {strides = array<i32>} : memref<1x1x8x8xf32, #tpu.memory_space<vmem>>, vector<1x1x8x8xf32>,
    %c2_i32 = arith.constant 2 : i32
    %25 = arith.cmpi eq, %arg2, %c2_i32 : i32
    %26 = arith.extui %25 : i1 to i32
    %c0_i32_20 = arith.constant 0 : i32
    %27 = arith.cmpi ne, %26, %c0_i32_20 : i32
    scf.if %27 {
      %c0_21 = arith.constant 0 : index
      %c0_22 = arith.constant 0 : index
      %c0_23 = arith.constant 0 : index
      %c0_24 = arith.constant 0 : index
      %28 = vector.load %arg5[%c0_21, %c0_22, %c0_23, %c0_24] : memref<1x1x8x8xf32, #tpu.memory_space<vmem>>, vector<1x1x8x8xf32>
      %29 = vector.shape_cast %28 : vector<1x1x8x8xf32> to vector<8x8xf32>
      %cst_25 = arith.constant dense<0.000000e+00> : vector<8xf32>
      %30 = vector.multi_reduction <add>, %29, %cst_25 [0] : vector<8x8xf32> to vector<8xf32>
      %31 = vector.shape_cast %30 : vector<8xf32> to vector<1x8xf32>
      %32 = arith.mulf %29, %29 : vector<8x8xf32>
      %cst_26 = arith.constant dense<0.000000e+00> : vector<8xf32>
      %33 = vector.multi_reduction <add>, %32, %cst_26 [0] : vector<8x8xf32> to vector<8xf32>
      %34 = vector.shape_cast %33 : vector<8xf32> to vector<1x8xf32>
      %35 = tpu.concatenate %31, %34 in 0 : vector<1x8xf32>, vector<1x8xf32> -> vector<2x8xf32>
      %c0_27 = arith.constant 0 : index
      %c0_28 = arith.constant 0 : index
      %c0_29 = arith.constant 0 : index
      %c0_30 = arith.constant 0 : index
      %36 = vector.load %arg6[%c0_27, %c0_28, %c0_29, %c0_30] : memref<1x1x2x8xf32, #tpu.memory_space<vmem>>, vector<1x1x2x8xf32>
      %37 = vector.shape_cast %36 : vector<1x1x2x8xf32> to vector<2x8xf32>
      %38 = vector.shape_cast %35 : vector<2x8xf32> to vector<1x1x2x8xf32>
      tpu.vector_store %arg6[%c0_27, %c0_28, %c0_29, %c0_30], %38 {strides = array<i32>} : memref<1x1x2x8xf32, #tpu.memory_space<vmem>>, vector<1x1x2x8xf32>,
    } else {
    }
    return
  }
  func.func @transform_0(%arg0: i32, %arg1: i32, %arg2: i32) -> (i32, i32, i32, i32) {
    %c2_i32 = arith.constant 2 : i32
    %0 = arith.muli %arg1, %c2_i32 : i32
    %1 = arith.addi %0, %arg2 : i32
    %c0_i32 = arith.constant 0 : i32
    %c0_i32_0 = arith.constant 0 : i32
    %c0_i32_1 = arith.constant 0 : i32
    return %arg0, %1, %c0_i32, %c0_i32_0 : i32, i32, i32, i32
  }
  func.func @transform_1(%arg0: i32, %arg1: i32, %arg2: i32) -> (i32, i32, i32, i32) {
    %c0_i32 = arith.constant 0 : i32
    %c0_i32_0 = arith.constant 0 : i32
    %c0_i32_1 = arith.constant 0 : i32
    %c0_i32_2 = arith.constant 0 : i32
    %c0_i32_3 = arith.constant 0 : i32
    return %c0_i32, %c0_i32_0, %c0_i32_1, %c0_i32_2 : i32, i32, i32, i32
  }
  func.func @transform_2(%arg0: i32, %arg1: i32, %arg2: i32) -> (i32, i32, i32, i32) {
    %c0_i32 = arith.constant 0 : i32
    %c0_i32_0 = arith.constant 0 : i32
    %c0_i32_1 = arith.constant 0 : i32
    return %arg0, %arg1, %c0_i32, %c0_i32_0 : i32, i32, i32, i32
  }
  func.func @transform_3(%arg0: i32, %arg1: i32, %arg2: i32) -> (i32, i32, i32, i32) {
    %c0_i32 = arith.constant 0 : i32
    %c0_i32_0 = arith.constant 0 : i32
    %c0_i32_1 = arith.constant 0 : i32
    return %arg0, %arg1, %c0_i32, %c0_i32_0 : i32, i32, i32, i32
  }
}

module attributes {stable_mosaic.version = 11 : i64} {
  func.func @_scale_shift_relu_kernel(%arg0: i32, %arg1: memref<16x64xf32, #tpu.memory_space<vmem>>, %arg2: memref<1x64xf32, #tpu.memory_space<vmem>>, %arg3: memref<1x64xf32, #tpu.memory_space<vmem>>, %arg4: memref<16x64xbf16, #tpu.memory_space<vmem>>) attributes {dimension_semantics = [#tpu.dimension_semantics<parallel>], iteration_bounds = array<i64: 1>, scalar_prefetch = 0 : i64, scratch_operands = 0 : i64, tpu.core_type = #tpu.core_type<tc>, window_params = [{transform_indices = @transform_0, window_bounds = array<i64: 16, 64>}, {pipeline_mode = #tpu.pipeline_mode<synchronous>, transform_indices = @transform_1, window_bounds = array<i64: 1, 64>}, {pipeline_mode = #tpu.pipeline_mode<synchronous>, transform_indices = @transform_2, window_bounds = array<i64: 1, 64>}, {transform_indices = @transform_3, window_bounds = array<i64: 16, 64>}]} {
    %c0 = arith.constant 0 : index
    %c0_0 = arith.constant 0 : index
    %0 = vector.load %arg1[%c0, %c0_0] : memref<16x64xf32, #tpu.memory_space<vmem>>, vector<16x64xf32>
    %c0_1 = arith.constant 0 : index
    %c0_2 = arith.constant 0 : index
    %1 = vector.load %arg2[%c0_1, %c0_2] : memref<1x64xf32, #tpu.memory_space<vmem>>, vector<1x64xf32>
    %2 = vector.broadcast %1 : vector<1x64xf32> to vector<16x64xf32>
    %3 = arith.mulf %0, %2 : vector<16x64xf32>
    %c0_3 = arith.constant 0 : index
    %c0_4 = arith.constant 0 : index
    %4 = vector.load %arg3[%c0_3, %c0_4] : memref<1x64xf32, #tpu.memory_space<vmem>>, vector<1x64xf32>
    %5 = vector.broadcast %4 : vector<1x64xf32> to vector<16x64xf32>
    %6 = arith.addf %3, %5 : vector<16x64xf32>
    %cst = arith.constant 0.000000e+00 : f32
    %7 = vector.broadcast %cst : f32 to vector<16x64xf32>
    %8 = arith.maximumf %6, %7 : vector<16x64xf32>
    %9 = arith.truncf %8 : vector<16x64xf32> to vector<16x64xbf16>
    %c0_5 = arith.constant 0 : index
    %c0_6 = arith.constant 0 : index
    %10 = vector.load %arg4[%c0_5, %c0_6] : memref<16x64xbf16, #tpu.memory_space<vmem>>, vector<16x64xbf16>
    tpu.vector_store %arg4[%c0_5, %c0_6], %9 {strides = array<i32>} : memref<16x64xbf16, #tpu.memory_space<vmem>>, vector<16x64xbf16>,
    return
  }
  func.func @transform_0(%arg0: i32) -> (i32, i32) {
    %c0_i32 = arith.constant 0 : i32
    %c0_i32_0 = arith.constant 0 : i32
    return %arg0, %c0_i32 : i32, i32
  }
  func.func @transform_1(%arg0: i32) -> (i32, i32) {
    %c0_i32 = arith.constant 0 : i32
    %c0_i32_0 = arith.constant 0 : i32
    %c0_i32_1 = arith.constant 0 : i32
    return %c0_i32, %c0_i32_0 : i32, i32
  }
  func.func @transform_2(%arg0: i32) -> (i32, i32) {
    %c0_i32 = arith.constant 0 : i32
    %c0_i32_0 = arith.constant 0 : i32
    %c0_i32_1 = arith.constant 0 : i32
    return %c0_i32, %c0_i32_0 : i32, i32
  }
  func.func @transform_3(%arg0: i32) -> (i32, i32) {
    %c0_i32 = arith.constant 0 : i32
    %c0_i32_0 = arith.constant 0 : i32
    return %arg0, %c0_i32 : i32, i32
  }
}

module attributes {stable_mosaic.version = 11 : i64} {
  func.func @_conv3x3_kernel(%arg0: i32, %arg1: i32, %arg2: i32, %arg3: memref<1x1x10x8xbf16, #tpu.memory_space<vmem>>, %arg4: memref<3x3x8x8xbf16, #tpu.memory_space<vmem>>, %arg5: memref<1x1x8x8xf32, #tpu.memory_space<vmem>>, %arg6: memref<1x1x2x8xf32, #tpu.memory_space<vmem>>) attributes {dimension_semantics = [#tpu.dimension_semantics<parallel>, #tpu.dimension_semantics<parallel>, #tpu.dimension_semantics<arbitrary>], iteration_bounds = array<i64: 2, 8, 3>, scalar_prefetch = 0 : i64, scratch_operands = 0 : i64, tpu.core_type = #tpu.core_type<tc>, window_params = [{transform_indices = @transform_0, window_bounds = array<i64: 1, 1, 10, 8>}, {pipeline_mode = #tpu.pipeline_mode<synchronous>, transform_indices = @transform_1, window_bounds = array<i64: 3, 3, 8, 8>}, {transform_indices = @transform_2, window_bounds = array<i64: 1, 1, 8, 8>}, {transform_indices = @transform_3, window_bounds = array<i64: 1, 1, 2, 8>}]} {
    %c0_i32 = arith.constant 0 : i32
    %0 = arith.cmpi eq, %arg2, %c0_i32 : i32
    %1 = arith.extui %0 : i1 to i32
    %c0_i32_0 = arith.constant 0 : i32
    %2 = arith.cmpi ne, %1, %c0_i32_0 : i32
    scf.if %2 {
      %cst_25 = arith.constant 0.000000e+00 : f32
      %34 = vector.broadcast %cst_25 : f32 to vector<1x1x8x8xf32>
      %c0_26 = arith.constant 0 : index
      %c0_27 = arith.constant 0 : index
      %c0_28 = arith.constant 0 : index
      %c0_29 = arith.constant 0 : index
      %35 = vector.load %arg5[%c0_26, %c0_27, %c0_28, %c0_29] : memref<1x1x8x8xf32, #tpu.memory_space<vmem>>, vector<1x1x8x8xf32>
      tpu.vector_store %arg5[%c0_26, %c0_27, %c0_28, %c0_29], %34 {strides = array<i32>} : memref<1x1x8x8xf32, #tpu.memory_space<vmem>>, vector<1x1x8x8xf32>,
    } else {
    }
    %3 = arith.index_cast %arg2 : i32 to index
    %c0 = arith.constant 0 : index
    %c0_1 = arith.constant 0 : index
    %c0_2 = arith.constant 0 : index
    %4 = vector.load %arg4[%3, %c0, %c0_1, %c0_2] : memref<3x3x8x8xbf16, #tpu.memory_space<vmem>>, vector<1x3x8x8xbf16>
    %5 = vector.shape_cast %4 : vector<1x3x8x8xbf16> to vector<3x8x8xbf16>
    %cst = arith.constant 0.000000e+00 : f32
    %6 = vector.broadcast %cst : f32 to vector<8x8xf32>
    %c0_3 = arith.constant 0 : index
    %c0_4 = arith.constant 0 : index
    %c0_5 = arith.constant 0 : index
    %c0_6 = arith.constant 0 : index
    %7 = vector.load %arg3[%c0_3, %c0_4, %c0_5, %c0_6] : memref<1x1x10x8xbf16, #tpu.memory_space<vmem>>, vector<1x1x8x8xbf16>
    %8 = vector.shape_cast %7 : vector<1x1x8x8xbf16> to vector<8x8xbf16>
    %9 = vector.extract_strided_slice %5 {offsets = [0, 0, 0], sizes = [1, 8, 8], strides = [1, 1, 1]} : vector<3x8x8xbf16> to vector<1x8x8xbf16>
    %10 = vector.shape_cast %9 : vector<1x8x8xbf16> to vector<8x8xbf16>
    %cst_7 = arith.constant dense<0.000000e+00> : vector<8x8xf32>
    %11 = tpu.matmul %8, %10, %cst_7 {dimension_numbers = #tpu.dot_dimension_numbers<[1], [0], [0], [1], [0, 0, 1, 1], [], []>} : vector<8x8xbf16>, vector<8x8xbf16>, vector<8x8xf32> -> vector<8x8xf32>
    %12 = arith.addf %6, %11 : vector<8x8xf32>
    %c0_8 = arith.constant 0 : index
    %c0_9 = arith.constant 0 : index
    %c1 = arith.constant 1 : index
    %c0_10 = arith.constant 0 : index
    %13 = vector.load %arg3[%c0_8, %c0_9, %c1, %c0_10] : memref<1x1x10x8xbf16, #tpu.memory_space<vmem>>, vector<1x1x8x8xbf16>
    %14 = vector.shape_cast %13 : vector<1x1x8x8xbf16> to vector<8x8xbf16>
    %15 = vector.extract_strided_slice %5 {offsets = [1, 0, 0], sizes = [1, 8, 8], strides = [1, 1, 1]} : vector<3x8x8xbf16> to vector<1x8x8xbf16>
    %16 = vector.shape_cast %15 : vector<1x8x8xbf16> to vector<8x8xbf16>
    %cst_11 = arith.constant dense<0.000000e+00> : vector<8x8xf32>
    %17 = tpu.matmul %14, %16, %cst_11 {dimension_numbers = #tpu.dot_dimension_numbers<[1], [0], [0], [1], [0, 0, 1, 1], [], []>} : vector<8x8xbf16>, vector<8x8xbf16>, vector<8x8xf32> -> vector<8x8xf32>
    %18 = arith.addf %12, %17 : vector<8x8xf32>
    %c0_12 = arith.constant 0 : index
    %c0_13 = arith.constant 0 : index
    %c2 = arith.constant 2 : index
    %c0_14 = arith.constant 0 : index
    %19 = vector.load %arg3[%c0_12, %c0_13, %c2, %c0_14] : memref<1x1x10x8xbf16, #tpu.memory_space<vmem>>, vector<1x1x8x8xbf16>
    %20 = vector.shape_cast %19 : vector<1x1x8x8xbf16> to vector<8x8xbf16>
    %21 = vector.extract_strided_slice %5 {offsets = [2, 0, 0], sizes = [1, 8, 8], strides = [1, 1, 1]} : vector<3x8x8xbf16> to vector<1x8x8xbf16>
    %22 = vector.shape_cast %21 : vector<1x8x8xbf16> to vector<8x8xbf16>
    %cst_15 = arith.constant dense<0.000000e+00> : vector<8x8xf32>
    %23 = tpu.matmul %20, %22, %cst_15 {dimension_numbers = #tpu.dot_dimension_numbers<[1], [0], [0], [1], [0, 0, 1, 1], [], []>} : vector<8x8xbf16>, vector<8x8xbf16>, vector<8x8xf32> -> vector<8x8xf32>
    %24 = arith.addf %18, %23 : vector<8x8xf32>
    %c0_16 = arith.constant 0 : index
    %c0_17 = arith.constant 0 : index
    %c0_18 = arith.constant 0 : index
    %c0_19 = arith.constant 0 : index
    %25 = vector.load %arg5[%c0_16, %c0_17, %c0_18, %c0_19] : memref<1x1x8x8xf32, #tpu.memory_space<vmem>>, vector<1x1x8x8xf32>
    %26 = vector.shape_cast %25 : vector<1x1x8x8xf32> to vector<8x8xf32>
    %27 = arith.addf %26, %24 : vector<8x8xf32>
    %c0_20 = arith.constant 0 : index
    %c0_21 = arith.constant 0 : index
    %c0_22 = arith.constant 0 : index
    %c0_23 = arith.constant 0 : index
    %28 = vector.load %arg5[%c0_20, %c0_21, %c0_22, %c0_23] : memref<1x1x8x8xf32, #tpu.memory_space<vmem>>, vector<1x1x8x8xf32>
    %29 = vector.shape_cast %28 : vector<1x1x8x8xf32> to vector<8x8xf32>
    %30 = vector.shape_cast %27 : vector<8x8xf32> to vector<1x1x8x8xf32>
    tpu.vector_store %arg5[%c0_20, %c0_21, %c0_22, %c0_23], %30 {strides = array<i32>} : memref<1x1x8x8xf32, #tpu.memory_space<vmem>>, vector<1x1x8x8xf32>,
    %c2_i32 = arith.constant 2 : i32
    %31 = arith.cmpi eq, %arg2, %c2_i32 : i32
    %32 = arith.extui %31 : i1 to i32
    %c0_i32_24 = arith.constant 0 : i32
    %33 = arith.cmpi ne, %32, %c0_i32_24 : i32
    scf.if %33 {
      %c0_25 = arith.constant 0 : index
      %c0_26 = arith.constant 0 : index
      %c0_27 = arith.constant 0 : index
      %c0_28 = arith.constant 0 : index
      %34 = vector.load %arg5[%c0_25, %c0_26, %c0_27, %c0_28] : memref<1x1x8x8xf32, #tpu.memory_space<vmem>>, vector<1x1x8x8xf32>
      %35 = vector.shape_cast %34 : vector<1x1x8x8xf32> to vector<8x8xf32>
      %cst_29 = arith.constant dense<0.000000e+00> : vector<8xf32>
      %36 = vector.multi_reduction <add>, %35, %cst_29 [0] : vector<8x8xf32> to vector<8xf32>
      %37 = vector.shape_cast %36 : vector<8xf32> to vector<1x8xf32>
      %38 = arith.mulf %35, %35 : vector<8x8xf32>
      %cst_30 = arith.constant dense<0.000000e+00> : vector<8xf32>
      %39 = vector.multi_reduction <add>, %38, %cst_30 [0] : vector<8x8xf32> to vector<8xf32>
      %40 = vector.shape_cast %39 : vector<8xf32> to vector<1x8xf32>
      %41 = tpu.concatenate %37, %40 in 0 : vector<1x8xf32>, vector<1x8xf32> -> vector<2x8xf32>
      %c0_31 = arith.constant 0 : index
      %c0_32 = arith.constant 0 : index
      %c0_33 = arith.constant 0 : index
      %c0_34 = arith.constant 0 : index
      %42 = vector.load %arg6[%c0_31, %c0_32, %c0_33, %c0_34] : memref<1x1x2x8xf32, #tpu.memory_space<vmem>>, vector<1x1x2x8xf32>
      %43 = vector.shape_cast %42 : vector<1x1x2x8xf32> to vector<2x8xf32>
      %44 = vector.shape_cast %41 : vector<2x8xf32> to vector<1x1x2x8xf32>
      tpu.vector_store %arg6[%c0_31, %c0_32, %c0_33, %c0_34], %44 {strides = array<i32>} : memref<1x1x2x8xf32, #tpu.memory_space<vmem>>, vector<1x1x2x8xf32>,
    } else {
    }
    return
  }
  func.func @transform_0(%arg0: i32, %arg1: i32, %arg2: i32) -> (i32, i32, i32, i32) {
    %c1_i32 = arith.constant 1 : i32
    %0 = arith.muli %arg1, %c1_i32 : i32
    %1 = arith.addi %0, %arg2 : i32
    %c0_i32 = arith.constant 0 : i32
    %c0_i32_0 = arith.constant 0 : i32
    %c0_i32_1 = arith.constant 0 : i32
    return %arg0, %1, %c0_i32, %c0_i32_0 : i32, i32, i32, i32
  }
  func.func @transform_1(%arg0: i32, %arg1: i32, %arg2: i32) -> (i32, i32, i32, i32) {
    %c0_i32 = arith.constant 0 : i32
    %c0_i32_0 = arith.constant 0 : i32
    %c0_i32_1 = arith.constant 0 : i32
    %c0_i32_2 = arith.constant 0 : i32
    %c0_i32_3 = arith.constant 0 : i32
    return %c0_i32, %c0_i32_0, %c0_i32_1, %c0_i32_2 : i32, i32, i32, i32
  }
  func.func @transform_2(%arg0: i32, %arg1: i32, %arg2: i32) -> (i32, i32, i32, i32) {
    %c0_i32 = arith.constant 0 : i32
    %c0_i32_0 = arith.constant 0 : i32
    %c0_i32_1 = arith.constant 0 : i32
    return %arg0, %arg1, %c0_i32, %c0_i32_0 : i32, i32, i32, i32
  }
  func.func @transform_3(%arg0: i32, %arg1: i32, %arg2: i32) -> (i32, i32, i32, i32) {
    %c0_i32 = arith.constant 0 : i32
    %c0_i32_0 = arith.constant 0 : i32
    %c0_i32_1 = arith.constant 0 : i32
    return %arg0, %arg1, %c0_i32, %c0_i32_0 : i32, i32, i32, i32
  }
}

module attributes {stable_mosaic.version = 11 : i64} {
  func.func @_scale_shift_add_relu_kernel(%arg0: i32, %arg1: memref<16x64xf32, #tpu.memory_space<vmem>>, %arg2: memref<16x64xf32, #tpu.memory_space<vmem>>, %arg3: memref<1x64xf32, #tpu.memory_space<vmem>>, %arg4: memref<1x64xf32, #tpu.memory_space<vmem>>, %arg5: memref<16x64xf32, #tpu.memory_space<vmem>>) attributes {dimension_semantics = [#tpu.dimension_semantics<parallel>], iteration_bounds = array<i64: 1>, scalar_prefetch = 0 : i64, scratch_operands = 0 : i64, tpu.core_type = #tpu.core_type<tc>, window_params = [{transform_indices = @transform_0, window_bounds = array<i64: 16, 64>}, {transform_indices = @transform_1, window_bounds = array<i64: 16, 64>}, {pipeline_mode = #tpu.pipeline_mode<synchronous>, transform_indices = @transform_2, window_bounds = array<i64: 1, 64>}, {pipeline_mode = #tpu.pipeline_mode<synchronous>, transform_indices = @transform_3, window_bounds = array<i64: 1, 64>}, {transform_indices = @transform_4, window_bounds = array<i64: 16, 64>}]} {
    %c0 = arith.constant 0 : index
    %c0_0 = arith.constant 0 : index
    %0 = vector.load %arg1[%c0, %c0_0] : memref<16x64xf32, #tpu.memory_space<vmem>>, vector<16x64xf32>
    %c0_1 = arith.constant 0 : index
    %c0_2 = arith.constant 0 : index
    %1 = vector.load %arg3[%c0_1, %c0_2] : memref<1x64xf32, #tpu.memory_space<vmem>>, vector<1x64xf32>
    %2 = vector.broadcast %1 : vector<1x64xf32> to vector<16x64xf32>
    %3 = arith.mulf %0, %2 : vector<16x64xf32>
    %c0_3 = arith.constant 0 : index
    %c0_4 = arith.constant 0 : index
    %4 = vector.load %arg4[%c0_3, %c0_4] : memref<1x64xf32, #tpu.memory_space<vmem>>, vector<1x64xf32>
    %5 = vector.broadcast %4 : vector<1x64xf32> to vector<16x64xf32>
    %6 = arith.addf %3, %5 : vector<16x64xf32>
    %c0_5 = arith.constant 0 : index
    %c0_6 = arith.constant 0 : index
    %7 = vector.load %arg2[%c0_5, %c0_6] : memref<16x64xf32, #tpu.memory_space<vmem>>, vector<16x64xf32>
    %8 = arith.addf %6, %7 : vector<16x64xf32>
    %cst = arith.constant 0.000000e+00 : f32
    %9 = vector.broadcast %cst : f32 to vector<16x64xf32>
    %10 = arith.maximumf %8, %9 : vector<16x64xf32>
    %c0_7 = arith.constant 0 : index
    %c0_8 = arith.constant 0 : index
    %11 = vector.load %arg5[%c0_7, %c0_8] : memref<16x64xf32, #tpu.memory_space<vmem>>, vector<16x64xf32>
    tpu.vector_store %arg5[%c0_7, %c0_8], %10 {strides = array<i32>} : memref<16x64xf32, #tpu.memory_space<vmem>>, vector<16x64xf32>,
    return
  }
  func.func @transform_0(%arg0: i32) -> (i32, i32) {
    %c0_i32 = arith.constant 0 : i32
    %c0_i32_0 = arith.constant 0 : i32
    return %arg0, %c0_i32 : i32, i32
  }
  func.func @transform_1(%arg0: i32) -> (i32, i32) {
    %c0_i32 = arith.constant 0 : i32
    %c0_i32_0 = arith.constant 0 : i32
    return %arg0, %c0_i32 : i32, i32
  }
  func.func @transform_2(%arg0: i32) -> (i32, i32) {
    %c0_i32 = arith.constant 0 : i32
    %c0_i32_0 = arith.constant 0 : i32
    %c0_i32_1 = arith.constant 0 : i32
    return %c0_i32, %c0_i32_0 : i32, i32
  }
  func.func @transform_3(%arg0: i32) -> (i32, i32) {
    %c0_i32 = arith.constant 0 : i32
    %c0_i32_0 = arith.constant 0 : i32
    %c0_i32_1 = arith.constant 0 : i32
    return %c0_i32, %c0_i32_0 : i32, i32
  }
  func.func @transform_4(%arg0: i32) -> (i32, i32) {
    %c0_i32 = arith.constant 0 : i32
    %c0_i32_0 = arith.constant 0 : i32
    return %arg0, %c0_i32 : i32, i32
  }
}

</mosaic_0001>

<llo_original>
// kernel: tile.28
$region0: #{tile.28}
  #allocation0 [shape = 's32[1]{0}', space=sflag, size = 0x4, scoped, tag = 'scoped memory for tile.28']
  %s0 = inlined_call_operand.vmem [shape: f32[8], index: 0, kind: input, shape index: {}]
  %s1 = inlined_call_operand.vmem [shape: f32[8,8], index: 1, kind: output, shape index: {}]
  // Predicated region
  $region2: #{tile.28} parent=0 // pred_check
    _
  $region3: #{tile.28} parent=0 // pred_check_branch
    %3 = sbr.rel (0) target = $region5
  $region4: #{tile.28} parent=0 // pred_region
    _
  $region5: #{tile.28} parent=0 // pred_fallthru
    _
  %v4 = vld [vmem:[%s0] ss:$0 sm:$0xff]
  %5 = vst [vmem:[%s1] sm:$0xff] %v4

// kernel: tile.29
$region0: #{tile.29}
  %s0 = inlined_call_operand.vmem [shape: f32[8,8], index: 0, kind: input, shape index: {}]
  %s1 = inlined_call_operand.vmem [shape: f32[1,64], index: 1, kind: output, shape index: {}]
  $region1: #{tile.29} parent=0
    #allocation0 [shape = 'u8[4096]{0}', space=vmem, size = 0x1000, scoped, tag = 'scoped mem for output reshape']
    %v2 = vld [vmem:[%s0] sm:$0x1]
    %vm3 = vcmask 64512
    %4 = vst.msk [vmem:[#allocation0] sm:$0x1] %vm3, %v2
    %s5 = scalar_lea.vmem %s0, 7
    %v6 = vld [vmem:[%s5] sm:$0x1]
    %7 = vrot.lane.b32.xlu0 %v6, 56
    %v8 = vpop.permute.xlu0 %7
    %vm9 = vcmask 523712
    %10 = vst.msk [vmem:[#allocation0] sm:$0x1] %vm9, %v8
    %s11 = scalar_lea.vmem %s0, 6
    %v12 = vld [vmem:[%s11] sm:$0x1]
    %13 = vrot.lane.b32.xlu0 %v12, 48
    %v14 = vpop.permute.xlu0 %13
    %vm15 = vcmask 458112
    %16 = vst.msk [vmem:[#allocation0] sm:$0x1] %vm15, %v14
    %s17 = scalar_lea.vmem %s0, 5
    %v18 = vld [vmem:[%s17] sm:$0x1]
    %19 = vrot.lane.b32.xlu0 %v18, 40
    %v20 = vpop.permute.xlu0 %19
    %vm21 = vcmask 392512
    %22 = vst.msk [vmem:[#allocation0] sm:$0x1] %vm21, %v20
    %s23 = scalar_lea.vmem %s0, 4
    %v24 = vld [vmem:[%s23] sm:$0x1]
    %25 = vrot.lane.b32.xlu0 %v24, 32
    %v26 = vpop.permute.xlu0 %25
    %vm27 = vcmask 326912
    %28 = vst.msk [vmem:[#allocation0] sm:$0x1] %vm27, %v26
    %s29 = scalar_lea.vmem %s0, 3
    %v30 = vld [vmem:[%s29] sm:$0x1]
    %31 = vrot.lane.b32.xlu0 %v30, 24
    %v32 = vpop.permute.xlu0 %31
    %vm33 = vcmask 261312
    %34 = vst.msk [vmem:[#allocation0] sm:$0x1] %vm33, %v32
    %s35 = scalar_lea.vmem %s0, 2
    %v36 = vld [vmem:[%s35] sm:$0x1]
    %37 = vrot.lane.b32.xlu0 %v36, 16
    %v38 = vpop.permute.xlu0 %37
    %vm39 = vcmask 195712
    %40 = vst.msk [vmem:[#allocation0] sm:$0x1] %vm39, %v38
    %s41 = scalar_lea.vmem %s0, 1
    %v42 = vld [vmem:[%s41] sm:$0x1]
    %43 = vrot.lane.b32.xlu0 %v42, 8
    %v44 = vpop.permute.xlu0 %43
    %vm45 = vcmask 130112
    %46 = vst.msk [vmem:[#allocation0] sm:$0x1] %vm45, %v44
    %s48 = ssub.s32 2, 1
    %v49 = vld [vmem:[#allocation0] sm:%s48]
    %s51 = ssub.s32 2, 1
    %52 = vst [vmem:[%s1] sm:%s51] %v49

// kernel: residual_forward.5
$region0: #{residual_forward.5}
  #allocation0 [shape = 'u32[]', space=smem, size = 0x4, offset = 0x4, fixed_abs, tag = 'smem constant byte address 0x4 - core index']
  #allocation1 [shape = 'u32[72,128]{1,0:T(1,128)}', space=vmem, size = 0x9000, scoped, tag = 'internal scratch']
  %s0 = inlined_call_operand.vmem [shape: bf16[2,18,9,8], index: 0, kind: input, shape index: {}]
  %s1 = inlined_call_operand.vmem [shape: bf16[3,2,8,8], index: 1, kind: input, shape index: {}]
  %s2 = inlined_call_operand.vmem [shape: f32[2,8,8,8], index: 2, kind: output, shape index: {0}]
  %s3 = inlined_call_operand.vmem [shape: f32[2,8,2,8], index: 3, kind: output, shape index: {1}]
  %4 = xla_tuple %s2, %s3
  %s5 = sld [smem:[#allocation0]]
  $region57: #{residual_forward.5} parent=0
    _
  %s7 = ssub.s32 1, %s5
  %s8 = scalar_select 0, %s7, %s5
  loop: start=0, step=1, limit=50
  $region2: #{residual_forward.5} parent=0 // loop_pre_header
    _
  $region3: #{residual_forward.5} parent=0 // loop_header
    %s10 = sphi 0, %s14
    %p11 = scmp.ge.s32.totalorder %s10, 50
    %s17 = sphi 0, %s36
    %s18 = sphi 0, %s32
    %s19 = sphi 0, %s28
    %s20 = sphi 0, %s17
    %s21 = sphi 0, %s18
    %s22 = sphi 0, %s19
    %s23 = sphi 0, %s20
    %s24 = sphi 0, %s21
    %s25 = sphi 0, %s22
    %s45 = sphi 0, %s47
    %s48 = sphi 0, %s45
    %s49 = sphi 0, %s48
    %s65 = sphi 0, %s49
    %s69 = sphi 0, %s69
    %s71 = sphi 0, %s69
    %s72 = sphi 0, %s71
    %s86 = sphi 0, %s72
    %s94 = sphi 0, %s96
    %s97 = sphi 0, %s94
    %s98 = sphi 0, %s97
    %s114 = sphi 0, %s98
    %s122 = sphi 0, %s124
    %s125 = sphi 0, %s122
    %s126 = sphi 0, %s125
    %s142 = sphi 0, %s126
  $region4: #{residual_forward.5} parent=0 // loop_header_branch
    %13 = sbr.rel (%p11) target = $region8
  $region5: #{residual_forward.5} parent=0 // loop_body
    %s15 = ssub.s32 %s10, 1
    %s16 = ssub.s32 %s10, 2
    %s26 = sadd.s32 1, %s19
    %p27 = scmp.ge.s32.totalorder %s26, 3
    %s28 = scalar_select %p27, 0, %s26
    %s29 = sadd.s32 1, %s18
    %s30 = scalar_select %p27, %s29, %s18
    %p31 = scmp.ge.s32.totalorder %s30, 8
    %s32 = scalar_select %p31, 0, %s30
    %s33 = sadd.s32 1, %s17
    %s34 = scalar_select %p31, %s33, %s17
    %p35 = scmp.ge.s32.totalorder %s34, 2
    %s36 = scalar_select %p35, 0, %s34
    %s37 = smul.u32 %s18, 2
    %s38 = sadd.s32 %s37, %s19
    %s39 = smul.u32 %s32, 2
    %s40 = sadd.s32 %s39, %s28
    %s41 = ssub.s32 %s17, %s36
    %s42 = ssub.s32 %s38, %s40
    %s43 = sor.u32 %s41, %s42
    %p44 = scmp.eq.s32.totalorder %s43, 0
    %s46 = sadd.s32 %s45, 1
    %s47 = scalar_select %p44, %s45, %s46
    %p50 = pneg %p44
    %p51 = scmp.eq.s32.totalorder %s10, 47
    %p52 = por %p50, %p51
    %p53 = scmp.ne.s32.totalorder %s45, %s48
    %p54 = scmp.eq.s32.totalorder %s10, 0
    %p55 = por %p53, %p54
    %p56 = scmp.ne.s32.totalorder %s45, %s48
    %p57 = scmp.eq.s32.totalorder %s15, 47
    %p58 = por %p56, %p57
    %p59 = scmp.ne.s32.totalorder %s48, %s49
    %p60 = scmp.eq.s32.totalorder %s15, 0
    %p61 = por %p59, %p60
    %p62 = scmp.ne.s32.totalorder %s48, %s49
    %p63 = scmp.eq.s32.totalorder %s16, 47
    %p64 = por %p62, %p63
    %p66 = scmp.ne.s32.totalorder %s49, %s65
    %p67 = scmp.eq.s32.totalorder %s16, 0
    %p68 = por %p66, %p67
    %s70 = sadd.s32 %s69, 1
    %p73 = scmp.eq.s32.totalorder %s10, 47
    %p74 = scmp.ne.s32.totalorder %s69, %s71
    %p75 = scmp.eq.s32.totalorder %s10, 0
    %p76 = por %p74, %p75
    %p77 = scmp.ne.s32.totalorder %s69, %s71
    %p78 = scmp.eq.s32.totalorder %s15, 47
    %p79 = por %p77, %p78
    %p80 = scmp.ne.s32.totalorder %s71, %s72
    %p81 = scmp.eq.s32.totalorder %s15, 0
    %p82 = por %p80, %p81
    %p83 = scmp.ne.s32.totalorder %s71, %s72
    %p84 = scmp.eq.s32.totalorder %s16, 47
    %p85 = por %p83, %p84
    %p87 = scmp.ne.s32.totalorder %s72, %s86
    %p88 = scmp.eq.s32.totalorder %s16, 0
    %p89 = por %p87, %p88
    %s90 = ssub.s32 %s17, %s36
    %s91 = ssub.s32 %s18, %s32
    %s92 = sor.u32 %s90, %s91
    %p93 = scmp.eq.s32.totalorder %s92, 0
    %s95 = sadd.s32 %s94, 1
    %s96 = scalar_select %p93, %s94, %s95
    %p99 = pneg %p93
    %p100 = scmp.eq.s32.totalorder %s10, 47
    %p101 = por %p99, %p100
    %p102 = scmp.ne.s32.totalorder %s94, %s97
    %p103 = scmp.eq.s32.totalorder %s10, 0
    %p104 = por %p102, %p103
    %p105 = scmp.ne.s32.totalorder %s94, %s97
    %p106 = scmp.eq.s32.totalorder %s15, 47
    %p107 = por %p105, %p106
    %p108 = scmp.ne.s32.totalorder %s97, %s98
    %p109 = scmp.eq.s32.totalorder %s15, 0
    %p110 = por %p108, %p109
    %p111 = scmp.ne.s32.totalorder %s97, %s98
    %p112 = scmp.eq.s32.totalorder %s16, 47
    %p113 = por %p111, %p112
    %p115 = scmp.ne.s32.totalorder %s98, %s114
    %p116 = scmp.eq.s32.totalorder %s16, 0
    %p117 = por %p115, %p116
    %s118 = ssub.s32 %s17, %s36
    %s119 = ssub.s32 %s18, %s32
    %s120 = sor.u32 %s118, %s119
    %p121 = scmp.eq.s32.totalorder %s120, 0
    %s123 = sadd.s32 %s122, 1
    %s124 = scalar_select %p121, %s122, %s123
    %p127 = pneg %p121
    %p128 = scmp.eq.s32.totalorder %s10, 47
    %p129 = por %p127, %p128
    %p130 = scmp.ne.s32.totalorder %s122, %s125
    %p131 = scmp.eq.s32.totalorder %s10, 0
    %p132 = por %p130, %p131
    %p133 = scmp.ne.s32.totalorder %s122, %s125
    %p134 = scmp.eq.s32.totalorder %s15, 47
    %p135 = por %p133, %p134
    %p136 = scmp.ne.s32.totalorder %s125, %s126
    %p137 = scmp.eq.s32.totalorder %s15, 0
    %p138 = por %p136, %p137
    %p139 = scmp.ne.s32.totalorder %s125, %s126
    %p140 = scmp.eq.s32.totalorder %s16, 47
    %p141 = por %p139, %p140
    %p143 = scmp.ne.s32.totalorder %s126, %s142
    %p144 = scmp.eq.s32.totalorder %s16, 0
    %p145 = por %p143, %p144
    %p146 = scmp.le.s32.totalorder 1, %s10
    %p147 = scmp.lt.s32.totalorder %s10, 49
    %p148 = pnand %p146, %p147
    %p149 = pneg %p148
    // Predicated region
    $region9: #{residual_forward.5} parent=5 // pred_check
      _
    $region10: #{residual_forward.5} parent=5 // pred_check_branch
      %151 = sbr.rel (%p148) target = $region12
    $region11: #{residual_forward.5} parent=5 // pred_region
      %s152 = ssub.s32 %s10, 1
      // Predicated region
      $region13: #{residual_forward.5} parent=11 // pred_check
        %p153 = pneg %p82
      $region14: #{residual_forward.5} parent=11 // pred_check_branch
        %155 = sbr.rel (%p153) target = $region16
      $region15: #{residual_forward.5} parent=11 // pred_region
        _
      $region16: #{residual_forward.5} parent=11 // pred_fallthru
        _
    $region12: #{residual_forward.5} parent=5 // pred_fallthru
      _
    %p156 = scmp.lt.s32.totalorder %s10, 48
    // Predicated region
    $region17: #{residual_forward.5} parent=5 // pred_check
      %p157 = pneg %p156
    $region18: #{residual_forward.5} parent=5 // pred_check_branch
      %159 = sbr.rel (%p157) target = $region20
    $region19: #{residual_forward.5} parent=5 // pred_region
      // Predicated region
      $region21: #{residual_forward.5} parent=19 // pred_check
        %p160 = pneg %p55
      $region22: #{residual_forward.5} parent=19 // pred_check_branch
        %162 = sbr.rel (%p160) target = $region24
      $region23: #{residual_forward.5} parent=19 // pred_region
        %s163 = smul.u32 %s18, 2
        %s164 = sadd.s32 %s163, %s19
        %p165 = scmp.lt.s32.totalorder %s17, 1
        %s166 = scalar_select %p165, %s17, 1
        %p167 = scmp.lt.s32.totalorder %s164, 17
        %s168 = scalar_select %p167, %s164, 17
        %s169 = smul.addr %s168, 2
        %s170 = smul.addr %s166, 36
        %s171 = sadd.s32 %s169, %s170
        %s172 = smul.addr %s171, 4
        %s173 = scalar_lea.vmem %s0, %s172
        %s174 = smul.u32 %s18, 2
        %s175 = sadd.s32 %s174, %s19
      $region24: #{residual_forward.5} parent=19 // pred_fallthru
        _
    $region20: #{residual_forward.5} parent=5 // pred_fallthru
      _
    %p176 = scmp.le.s32.totalorder 1, %s10
    %p177 = scmp.lt.s32.totalorder %s10, 49
    %p178 = pnand %p176, %p177
    %p179 = pneg %p178
    // Predicated region
    $region25: #{residual_forward.5} parent=5 // pred_check
      _
    $region26: #{residual_forward.5} parent=5 // pred_check_branch
      %181 = sbr.rel (%p178) target = $region28
    $region27: #{residual_forward.5} parent=5 // pred_region
      %s182 = ssub.s32 %s10, 1
      %s183 = smul.u32 %s21, 2
      %s184 = sadd.s32 %s183, %s22
      %p185 = scmp.lt.s32.totalorder %s20, 1
      %s186 = scalar_select %p185, %s20, 1
      %p187 = scmp.lt.s32.totalorder %s184, 17
      %s188 = scalar_select %p187, %s184, 17
      %s189 = smul.addr %s188, 2
      %s190 = smul.addr %s186, 36
      %s191 = sadd.s32 %s189, %s190
      %s192 = smul.addr %s191, 4
      %s193 = scalar_lea.vmem %s0, %s192
      %p194 = pneg %p61
      %p195 = pneg %p58
      %p196 = pneg %p82
      %p197 = pneg %p79
      %p198 = pneg %p110
      %p199 = pneg %p107
      %p200 = scmp.lt.s32.totalorder %s20, 1
      %s201 = scalar_select %p200, %s20, 1
      %p202 = scmp.lt.s32.totalorder %s21, 7
      %s203 = scalar_select %p202, %s21, 7
      %s204 = smul.addr %s201, 8
      %s205 = sadd.s32 %s203, %s204
      %s206 = smul.addr %s205, 8
      %s207 = scalar_lea.vmem %s2, %s206
      %p208 = pneg %p138
      %p209 = pneg %p135
      %p210 = scmp.lt.s32.totalorder %s20, 1
      %s211 = scalar_select %p210, %s20, 1
      %p212 = scmp.lt.s32.totalorder %s21, 7
      %s213 = scalar_select %p212, %s21, 7
      %s214 = smul.addr %s211, 8
      %s215 = sadd.s32 %s213, %s214
      %s216 = smul.addr %s215, 2
      %s217 = scalar_lea.vmem %s3, %s216
      %s218 = smul.u32 %s21, 2
      %s219 = sadd.s32 %s218, %s22
      %p220 = scmp.lt.s32.totalorder %s20, 1
      %s221 = scalar_select %p220, %s20, 1
      %p222 = scmp.lt.s32.totalorder %s219, 17
      %s223 = scalar_select %p222, %s219, 17
      %s224 = smul.addr %s223, 2
      %s225 = smul.addr %s221, 36
      %s226 = sadd.s32 %s224, %s225
      %s227 = smul.addr %s226, 4
      %s228 = scalar_lea.vmem %s0, %s227
      %s229 = smul.u32 %s21, 2
      %s230 = sadd.s32 %s229, %s22
      %p231 = scmp.lt.s32.totalorder %s20, 1
      %s232 = scalar_select %p231, %s20, 1
      %p233 = scmp.lt.s32.totalorder %s21, 7
      %s234 = scalar_select %p233, %s21, 7
      %s235 = smul.addr %s232, 8
      %s236 = sadd.s32 %s234, %s235
      %s237 = smul.addr %s236, 8
      %s238 = scalar_lea.vmem %s2, %s237
      %p239 = scmp.lt.s32.totalorder %s20, 1
      %s240 = scalar_select %p239, %s20, 1
      %p241 = scmp.lt.s32.totalorder %s21, 7
      %s242 = scalar_select %p241, %s21, 7
      %s243 = smul.addr %s240, 8
      %s244 = sadd.s32 %s242, %s243
      %s245 = smul.addr %s244, 2
      %s246 = scalar_lea.vmem %s3, %s245
      %p248 = scmp.eq.s32.totalorder %s22, 0
      // Predicated region
      $region29: #{residual_forward.5} parent=27 // pred_check
        %p249 = pneg %p248
      $region30: #{residual_forward.5} parent=27 // pred_check_branch
        %251 = sbr.rel (%p249) target = $region32
      $region31: #{residual_forward.5} parent=27 // pred_region
        %vm252 = vcmask 64512
        %253 = vst.msk [vmem:[%s238] sm:$0xff] %vm252, 0.0
      $region32: #{residual_forward.5} parent=27 // pred_fallthru
        _
      %s254 = smul.u32 %s22, 2
      %s255 = smul.addr %s254, 4
      %s256 = scalar_lea.vmem %s1, %s255
      %v257 = vld [vmem:[%s256] sm:$0xf]
      %v258 = vld [vmem:[%s256 + $0x4] sm:$0xf]
      %v259 = vld [vmem:[%s228] sm:$0xf]
      %v260 = vld [vmem:[%s228 + $0x4] sm:$0x1]
      %v263 = vunpack.c.l.b16 %v259
      %v264 = vunpack.c.l.b16 %v260
      %v265 = vpack.c.b16 %v264, %v263
      %v267 = vshrl.u32 %v265, 16
      %v269 = vshll.u32 %v265, 16
      %v271 = vrot.slane %v269, 1
      %v272 = vor.u32 %v267, %v271
      %vm273 = vcmask 64512
      %v275 = vsel %vm273, %v272, 0
      %vm277 = vcmask 1043456
      %v279 = vsel %vm277, %v258, 0
      %281 = vmatpush.bf16.msra.mxu0 0
      %282 = vmatpush.bf16.msra.mxu0 0
      %283 = vmatpush.bf16.msra.mxu0 0
      %284 = vmatpush.bf16.msra.mxu0 0
      %285 = vmatpush.bf16.msra.mxu0 0
      %286 = vmatpush.bf16.msra.mxu0 0
      %287 = vmatpush.bf16.msra.mxu0 0
      %288 = vmatpush.bf16.msra.mxu0 %v279
      %289 = vmatmul.bf16.gmra.mxu0 %v275
      %v290 = vpop.f32.mrf.mxu0
      %v291 = vadd.f32 0.0, %v290
      %v292 = vpop.f32.mrf.mxu0
      %293 = vdwg.mxu0
      %v295 = vsel %vm273, %v259, 0
      %v298 = vsel %vm277, %v257, 0
      %300 = vmatpush.bf16.msra.mxu0 0
      %301 = vmatpush.bf16.msra.mxu0 0
      %302 = vmatpush.bf16.msra.mxu0 0
      %303 = vmatpush.bf16.msra.mxu0 0
      %304 = vmatpush.bf16.msra.mxu0 0
      %305 = vmatpush.bf16.msra.mxu0 0
      %306 = vmatpush.bf16.msra.mxu0 0
      %307 = vmatpush.bf16.msra.mxu0 %v298
      %308 = vmatmul.bf16.gmra.mxu0 %v295
      %v309 = vpop.f32.mrf.mxu0
      %v310 = vadd.f32 %v291, %v309
      %v311 = vpop.f32.mrf.mxu0
      %312 = vdwg.mxu0
      %v313 = vld [vmem:[%s238] sm:$0xff]
      %v314 = vadd.f32 %v313, %v310
      %315 = vst.msk [vmem:[%s238] sm:$0xff] %vm273, %v314
      %p316 = scmp.eq.s32.totalorder %s22, 2
      // Predicated region
      $region33: #{residual_forward.5} parent=27 // pred_check
        %p317 = pneg %p316
      $region34: #{residual_forward.5} parent=27 // pred_check_branch
        %319 = sbr.rel (%p317) target = $region36
      $region35: #{residual_forward.5} parent=27 // pred_region
        %v320 = vld [vmem:[%s238] sm:$0xff]
        %v321 = vsel %vm273, %v320, 0.0
        %v322 = vrot.slane %v321, 4
        %v323 = vadd.f32 %v321, %v322
        %v324 = vrot.slane %v323, 2
        %v325 = vadd.f32 %v323, %v324
        %v326 = vrot.slane %v325, 1
        %v327 = vadd.f32 %v325, %v326
        %v328 = vmul.f32 %v320, %v320
        %v329 = vsel %vm273, %v328, 0.0
        %v330 = vrot.slane %v329, 4
        %v331 = vadd.f32 %v329, %v330
        %v332 = vrot.slane %v331, 2
        %v333 = vadd.f32 %v331, %v332
        %v334 = vrot.slane %v333, 1
        %v335 = vadd.f32 %v333, %v334
        %vm336 = vcmask 1040384
        %v337 = vsel %vm336, %v327, %v335
        %vm338 = vcmask 58368
        %339 = vst.msk [vmem:[%s246] sm:$0x3] %vm338, %v337
      $region36: #{residual_forward.5} parent=27 // pred_fallthru
        _
      %p340 = scmp.lt.s32.totalorder %s20, 1
      %s341 = scalar_select %p340, %s20, 1
      %p342 = scmp.lt.s32.totalorder %s21, 7
      %s343 = scalar_select %p342, %s21, 7
      %s344 = smul.addr %s341, 8
      %s345 = sadd.s32 %s343, %s344
      %s346 = smul.addr %s345, 8
      %s347 = scalar_lea.vmem %s2, %s346
      %p348 = scmp.lt.s32.totalorder %s20, 1
      %s349 = scalar_select %p348, %s20, 1
      %p350 = scmp.lt.s32.totalorder %s21, 7
      %s351 = scalar_select %p350, %s21, 7
      %s352 = smul.addr %s349, 8
      %s353 = sadd.s32 %s351, %s352
      %s354 = smul.addr %s353, 2
      %s355 = scalar_lea.vmem %s3, %s354
      // Predicated region
      $region37: #{residual_forward.5} parent=27 // pred_check
        %p356 = pneg %p107
      $region38: #{residual_forward.5} parent=27 // pred_check_branch
        %358 = sbr.rel (%p356) target = $region40
      $region39: #{residual_forward.5} parent=27 // pred_region
        _
      $region40: #{residual_forward.5} parent=27 // pred_fallthru
        _
      // Predicated region
      $region41: #{residual_forward.5} parent=27 // pred_check
        %p359 = pneg %p135
      $region42: #{residual_forward.5} parent=27 // pred_check_branch
        %361 = sbr.rel (%p359) target = $region44
      $region43: #{residual_forward.5} parent=27 // pred_region
        _
      $region44: #{residual_forward.5} parent=27 // pred_fallthru
        _
    $region28: #{residual_forward.5} parent=5 // pred_fallthru
      _
    %p362 = scmp.le.s32.totalorder 2, %s10
    // Predicated region
    $region45: #{residual_forward.5} parent=5 // pred_check
      %p363 = pneg %p362
    $region46: #{residual_forward.5} parent=5 // pred_check_branch
      %365 = sbr.rel (%p363) target = $region48
    $region47: #{residual_forward.5} parent=5 // pred_region
      %s366 = ssub.s32 %s10, 2
      // Predicated region
      $region49: #{residual_forward.5} parent=47 // pred_check
        %p367 = pneg %p113
      $region50: #{residual_forward.5} parent=47 // pred_check_branch
        %369 = sbr.rel (%p367) target = $region52
      $region51: #{residual_forward.5} parent=47 // pred_region
        %p370 = scmp.lt.s32.totalorder %s23, 1
        %s371 = scalar_select %p370, %s23, 1
        %p372 = scmp.lt.s32.totalorder %s24, 7
        %s373 = scalar_select %p372, %s24, 7
        %s374 = smul.addr %s371, 8
        %s375 = sadd.s32 %s373, %s374
        %s376 = smul.addr %s375, 8
        %s377 = scalar_lea.vmem %s2, %s376
      $region52: #{residual_forward.5} parent=47 // pred_fallthru
        _
      // Predicated region
      $region53: #{residual_forward.5} parent=47 // pred_check
        %p378 = pneg %p141
      $region54: #{residual_forward.5} parent=47 // pred_check_branch
        %380 = sbr.rel (%p378) target = $region56
      $region55: #{residual_forward.5} parent=47 // pred_region
        %p381 = scmp.lt.s32.totalorder %s23, 1
        %s382 = scalar_select %p381, %s23, 1
        %p383 = scmp.lt.s32.totalorder %s24, 7
        %s384 = scalar_select %p383, %s24, 7
        %s385 = smul.addr %s382, 8
        %s386 = sadd.s32 %s384, %s385
        %s387 = smul.addr %s386, 2
        %s388 = scalar_lea.vmem %s3, %s387
      $region56: #{residual_forward.5} parent=47 // pred_fallthru
        _
    $region48: #{residual_forward.5} parent=5 // pred_fallthru
      _
  $region6: #{residual_forward.5} parent=0 // loop_footer
    %s14 = sadd.s32 1, %s10
  $region7: #{residual_forward.5} parent=0 // loop_footer_branch
    %9 = sbr.rel target = $region3
  $region8: #{residual_forward.5} parent=0 // loop_exit
    _

// kernel: residual_forward.8
$region0: #{residual_forward.8}
  #allocation0 [shape = 'u32[]', space=smem, size = 0x4, offset = 0x4, fixed_abs, tag = 'smem constant byte address 0x4 - core index']
  #allocation1 [shape = 'u32[72,128]{1,0:T(1,128)}', space=vmem, size = 0x9000, scoped, tag = 'internal scratch']
  %s0 = inlined_call_operand.vmem [shape: bf16[128,4], index: 0, kind: input, shape index: {}]
  %s1 = inlined_call_operand.vmem [shape: bf16[4,8], index: 1, kind: input, shape index: {}]
  %s2 = inlined_call_operand.vmem [shape: f32[1,8], index: 2, kind: input, shape index: {}]
  %s3 = inlined_call_operand.vmem [shape: f32[128,8], index: 3, kind: output, shape index: {}]
  %s4 = sld [smem:[#allocation0]]
  $region22: #{residual_forward.8} parent=0
    _
  %s6 = ssub.s32 1, %s4
  %s7 = scalar_select 0, %s6, %s4
  // Predicated region
  $region2: #{residual_forward.8} parent=0 // pred_check
    _
  $region3: #{residual_forward.8} parent=0 // pred_check_branch
    %9 = sbr.rel (0) target = $region5
  $region4: #{residual_forward.8} parent=0 // pred_region
    _
  $region5: #{residual_forward.8} parent=0 // pred_fallthru
    _
  // Predicated region
  $region6: #{residual_forward.8} parent=0 // pred_check
    _
  $region7: #{residual_forward.8} parent=0 // pred_check_branch
    %11 = sbr.rel (0) target = $region9
  $region8: #{residual_forward.8} parent=0 // pred_region
    _
  $region9: #{residual_forward.8} parent=0 // pred_fallthru
    _
  // Predicated region
  $region10: #{residual_forward.8} parent=0 // pred_check
    _
  $region11: #{residual_forward.8} parent=0 // pred_check_branch
    %13 = sbr.rel (0) target = $region13
  $region12: #{residual_forward.8} parent=0 // pred_region
    _
  $region13: #{residual_forward.8} parent=0 // pred_fallthru
    _
  %v15 = vld [vmem:[%s0] sm:$0xf]
  %v16 = vld [vmem:[%s0 + $0x4] sm:$0xf]
  %v17 = vld [vmem:[%s0 + $0x8] sm:$0xf]
  %v18 = vld [vmem:[%s0 + $0xc] sm:$0xf]
  %v19 = vld [vmem:[%s0 + $0x10] sm:$0xf]
  %v20 = vld [vmem:[%s0 + $0x14] sm:$0xf]
  %v21 = vld [vmem:[%s0 + $0x18] sm:$0xf]
  %v22 = vld [vmem:[%s0 + $0x1c] sm:$0xf]
  %v23 = vld [vmem:[%s0 + $0x20] sm:$0xf]
  %v24 = vld [vmem:[%s0 + $0x24] sm:$0xf]
  %v25 = vld [vmem:[%s0 + $0x28] sm:$0xf]
  %v26 = vld [vmem:[%s0 + $0x2c] sm:$0xf]
  %v27 = vld [vmem:[%s0 + $0x30] sm:$0xf]
  %v28 = vld [vmem:[%s0 + $0x34] sm:$0xf]
  %v29 = vld [vmem:[%s0 + $0x38] sm:$0xf]
  %v30 = vld [vmem:[%s0 + $0x3c] sm:$0xf]
  %v31 = vld [vmem:[%s1] sm:$0x3]
  %v32 = vld [vmem:[%s2] sm:$0x1]
  %v34 = vperm.slane %v32, 0
  %v52 = vunpack.c.l.b16 %v15
  %v53 = vunpack.c.l.b16 %v16
  %v54 = vunpack.c.l.b16 %v17
  %v55 = vunpack.c.l.b16 %v18
  %v56 = vunpack.c.l.b16 %v19
  %v57 = vunpack.c.l.b16 %v20
  %v58 = vunpack.c.l.b16 %v21
  %v59 = vunpack.c.l.b16 %v22
  %v60 = vunpack.c.l.b16 %v23
  %v61 = vunpack.c.l.b16 %v24
  %v62 = vunpack.c.l.b16 %v25
  %v63 = vunpack.c.l.b16 %v26
  %v64 = vunpack.c.l.b16 %v27
  %v65 = vunpack.c.l.b16 %v28
  %v66 = vunpack.c.l.b16 %v29
  %v67 = vunpack.c.l.b16 %v30
  %v68 = vpack.c.b16 %v53, %v52
  %v69 = vpack.c.b16 %v55, %v54
  %v70 = vpack.c.b16 %v57, %v56
  %v71 = vpack.c.b16 %v59, %v58
  %v72 = vpack.c.b16 %v61, %v60
  %v73 = vpack.c.b16 %v63, %v62
  %v74 = vpack.c.b16 %v65, %v64
  %v75 = vpack.c.b16 %v67, %v66
  %vm76 = vcmask 31744
  %v78 = vsel %vm76, %v68, 0
  %v81 = vsel %vm76, %v69, 0
  %v84 = vsel %vm76, %v70, 0
  %v87 = vsel %vm76, %v71, 0
  %v90 = vsel %vm76, %v72, 0
  %v93 = vsel %vm76, %v73, 0
  %v96 = vsel %vm76, %v74, 0
  %v99 = vsel %vm76, %v75, 0
  %vm101 = vcmask 1041408
  %v103 = vsel %vm101, %v31, 0
  %105 = vmatpush.bf16.msra.mxu0 0
  %106 = vmatpush.bf16.msra.mxu0 0
  %107 = vmatpush.bf16.msra.mxu0 0
  %108 = vmatpush.bf16.msra.mxu0 0
  %109 = vmatpush.bf16.msra.mxu0 0
  %110 = vmatpush.bf16.msra.mxu0 0
  %111 = vmatpush.bf16.msra.mxu0 0
  %112 = vmatpush.bf16.msra.mxu0 %v103
  %113 = vmatmul.bf16.gmra.mxu0 %v78
  %v114 = vpop.f32.mrf.mxu0
  %v115 = vadd.f32 %v34, %v114
  %v116 = vpop.f32.mrf.mxu0
  %v117 = vadd.f32 %v34, %v116
  %118 = vmatmul.bf16.gmra.mxu0 %v81
  %v119 = vpop.f32.mrf.mxu0
  %v120 = vadd.f32 %v34, %v119
  %v121 = vpop.f32.mrf.mxu0
  %v122 = vadd.f32 %v34, %v121
  %123 = vmatmul.bf16.gmra.mxu0 %v84
  %v124 = vpop.f32.mrf.mxu0
  %v125 = vadd.f32 %v34, %v124
  %v126 = vpop.f32.mrf.mxu0
  %v127 = vadd.f32 %v34, %v126
  %128 = vmatmul.bf16.gmra.mxu0 %v87
  %v129 = vpop.f32.mrf.mxu0
  %v130 = vadd.f32 %v34, %v129
  %v131 = vpop.f32.mrf.mxu0
  %v132 = vadd.f32 %v34, %v131
  %133 = vmatmul.bf16.gmra.mxu0 %v90
  %v134 = vpop.f32.mrf.mxu0
  %v135 = vadd.f32 %v34, %v134
  %v136 = vpop.f32.mrf.mxu0
  %v137 = vadd.f32 %v34, %v136
  %138 = vmatmul.bf16.gmra.mxu0 %v93
  %v139 = vpop.f32.mrf.mxu0
  %v140 = vadd.f32 %v34, %v139
  %v141 = vpop.f32.mrf.mxu0
  %v142 = vadd.f32 %v34, %v141
  %143 = vmatmul.bf16.gmra.mxu0 %v96
  %v144 = vpop.f32.mrf.mxu0
  %v145 = vadd.f32 %v34, %v144
  %v146 = vpop.f32.mrf.mxu0
  %v147 = vadd.f32 %v34, %v146
  %148 = vmatmul.bf16.gmra.mxu0 %v99
  %v149 = vpop.f32.mrf.mxu0
  %v150 = vadd.f32 %v34, %v149
  %v151 = vpop.f32.mrf.mxu0
  %v152 = vadd.f32 %v34, %v151
  %153 = vdwg.mxu0
  %vm154 = vcmask 64512
  %155 = vst.msk [vmem:[%s3] sm:$0xff] %vm154, %v115
  %156 = vst.msk [vmem:[%s3 + $0x8] sm:$0xff] %vm154, %v117
  %157 = vst.msk [vmem:[%s3 + $0x10] sm:$0xff] %vm154, %v120
  %158 = vst.msk [vmem:[%s3 + $0x18] sm:$0xff] %vm154, %v122
  %159 = vst.msk [vmem:[%s3 + $0x20] sm:$0xff] %vm154, %v125
  %160 = vst.msk [vmem:[%s3 + $0x28] sm:$0xff] %vm154, %v127
  %161 = vst.msk [vmem:[%s3 + $0x30] sm:$0xff] %vm154, %v130
  %162 = vst.msk [vmem:[%s3 + $0x38] sm:$0xff] %vm154, %v132
  %163 = vst.msk [vmem:[%s3 + $0x40] sm:$0xff] %vm154, %v135
  %164 = vst.msk [vmem:[%s3 + $0x48] sm:$0xff] %vm154, %v137
  %165 = vst.msk [vmem:[%s3 + $0x50] sm:$0xff] %vm154, %v140
  %166 = vst.msk [vmem:[%s3 + $0x58] sm:$0xff] %vm154, %v142
  %167 = vst.msk [vmem:[%s3 + $0x60] sm:$0xff] %vm154, %v145
  %168 = vst.msk [vmem:[%s3 + $0x68] sm:$0xff] %vm154, %v147
  %169 = vst.msk [vmem:[%s3 + $0x70] sm:$0xff] %vm154, %v150
  %170 = vst.msk [vmem:[%s3 + $0x78] sm:$0xff] %vm154, %v152
  // Predicated region
  $region14: #{residual_forward.8} parent=0 // pred_check
    _
  $region15: #{residual_forward.8} parent=0 // pred_check_branch
    %172 = sbr.rel (0) target = $region17
  $region16: #{residual_forward.8} parent=0 // pred_region
    _
  $region17: #{residual_forward.8} parent=0 // pred_fallthru
    _
  // Predicated region
  $region18: #{residual_forward.8} parent=0 // pred_check
    _
  $region19: #{residual_forward.8} parent=0 // pred_check_branch
    %174 = sbr.rel (0) target = $region21
  $region20: #{residual_forward.8} parent=0 // pred_region
    _
  $region21: #{residual_forward.8} parent=0 // pred_fallthru
    _

// kernel: residual_forward.6
$region0: #{residual_forward.6}
  #allocation0 [shape = 'u32[]', space=smem, size = 0x4, offset = 0x4, fixed_abs, tag = 'smem constant byte address 0x4 - core index']
  #allocation1 [shape = 'u32[72,128]{1,0:T(1,128)}', space=vmem, size = 0x9000, scoped, tag = 'internal scratch']
  %s0 = inlined_call_operand.vmem [shape: f32[16,64], index: 0, kind: input, shape index: {}]
  %s1 = inlined_call_operand.vmem [shape: f32[1,64], index: 1, kind: input, shape index: {}]
  %s2 = inlined_call_operand.vmem [shape: f32[1,64], index: 2, kind: input, shape index: {}]
  %s3 = inlined_call_operand.vmem [shape: bf16[16,64], index: 3, kind: output, shape index: {}]
  %s4 = sld [smem:[#allocation0]]
  $region22: #{residual_forward.6} parent=0
    _
  %s6 = ssub.s32 1, %s4
  %s7 = scalar_select 0, %s6, %s4
  // Predicated region
  $region2: #{residual_forward.6} parent=0 // pred_check
    _
  $region3: #{residual_forward.6} parent=0 // pred_check_branch
    %9 = sbr.rel (0) target = $region5
  $region4: #{residual_forward.6} parent=0 // pred_region
    _
  $region5: #{residual_forward.6} parent=0 // pred_fallthru
    _
  // Predicated region
  $region6: #{residual_forward.6} parent=0 // pred_check
    _
  $region7: #{residual_forward.6} parent=0 // pred_check_branch
    %11 = sbr.rel (0) target = $region9
  $region8: #{residual_forward.6} parent=0 // pred_region
    _
  $region9: #{residual_forward.6} parent=0 // pred_fallthru
    _
  // Predicated region
  $region10: #{residual_forward.6} parent=0 // pred_check
    _
  $region11: #{residual_forward.6} parent=0 // pred_check_branch
    %13 = sbr.rel (0) target = $region13
  $region12: #{residual_forward.6} parent=0 // pred_region
    _
  $region13: #{residual_forward.6} parent=0 // pred_fallthru
    _
  %v14 = vld [vmem:[%s0] sm:$0xff]
  %v15 = vld [vmem:[%s0 + $0x8] sm:$0xff]
  %v16 = vld [vmem:[%s1] sm:$0x1]
  %v18 = vperm.slane %v16, 0
  %v20 = vmul.f32 %v14, %v18
  %v21 = vmul.f32 %v15, %v18
  %v22 = vld [vmem:[%s2] sm:$0x1]
  %v24 = vperm.slane %v22, 0
  %v26 = vadd.f32 %v20, %v24
  %v27 = vadd.f32 %v21, %v24
  %v28 = vmax.f32 %v26, 0.0
  %v29 = vmax.f32 %v27, 0.0
  %v30 = vpack.c.bf16 %v28, %v28
  %v31 = vpack.c.bf16 %v29, %v29
  %vm32 = vcmask 519168
  %33 = vst.msk [vmem:[%s3] sm:$0xf] %vm32, %v30
  %34 = vst.msk [vmem:[%s3 + $0x4] sm:$0xf] %vm32, %v31
  // Predicated region
  $region14: #{residual_forward.6} parent=0 // pred_check
    _
  $region15: #{residual_forward.6} parent=0 // pred_check_branch
    %36 = sbr.rel (0) target = $region17
  $region16: #{residual_forward.6} parent=0 // pred_region
    _
  $region17: #{residual_forward.6} parent=0 // pred_fallthru
    _
  // Predicated region
  $region18: #{residual_forward.6} parent=0 // pred_check
    _
  $region19: #{residual_forward.6} parent=0 // pred_check_branch
    %38 = sbr.rel (0) target = $region21
  $region20: #{residual_forward.6} parent=0 // pred_region
    _
  $region21: #{residual_forward.6} parent=0 // pred_fallthru
    _

// kernel: residual_forward.7
$region0: #{residual_forward.7}
  #allocation0 [shape = 'u32[]', space=smem, size = 0x4, offset = 0x4, fixed_abs, tag = 'smem constant byte address 0x4 - core index']
  #allocation1 [shape = 'u32[72,128]{1,0:T(1,128)}', space=vmem, size = 0x9000, scoped, tag = 'internal scratch']
  %s0 = inlined_call_operand.vmem [shape: bf16[2,10,10,8], index: 0, kind: input, shape index: {}]
  %s1 = inlined_call_operand.vmem [shape: bf16[3,3,8,8], index: 1, kind: input, shape index: {}]
  %s2 = inlined_call_operand.vmem [shape: f32[2,8,8,8], index: 2, kind: output, shape index: {0}]
  %s3 = inlined_call_operand.vmem [shape: f32[2,8,2,8], index: 3, kind: output, shape index: {1}]
  %4 = xla_tuple %s2, %s3
  %s5 = sld [smem:[#allocation0]]
  $region57: #{residual_forward.7} parent=0
    _
  %s7 = ssub.s32 1, %s5
  %s8 = scalar_select 0, %s7, %s5
  loop: start=0, step=1, limit=50
  $region2: #{residual_forward.7} parent=0 // loop_pre_header
    _
  $region3: #{residual_forward.7} parent=0 // loop_header
    %s10 = sphi 0, %s14
    %p11 = scmp.ge.s32.totalorder %s10, 50
    %s17 = sphi 0, %s36
    %s18 = sphi 0, %s32
    %s19 = sphi 0, %s28
    %s20 = sphi 0, %s17
    %s21 = sphi 0, %s18
    %s22 = sphi 0, %s19
    %s23 = sphi 0, %s20
    %s24 = sphi 0, %s21
    %s25 = sphi 0, %s22
    %s43 = sphi 0, %s45
    %s46 = sphi 0, %s43
    %s47 = sphi 0, %s46
    %s63 = sphi 0, %s47
    %s67 = sphi 0, %s67
    %s69 = sphi 0, %s67
    %s70 = sphi 0, %s69
    %s84 = sphi 0, %s70
    %s92 = sphi 0, %s94
    %s95 = sphi 0, %s92
    %s96 = sphi 0, %s95
    %s112 = sphi 0, %s96
    %s120 = sphi 0, %s122
    %s123 = sphi 0, %s120
    %s124 = sphi 0, %s123
    %s140 = sphi 0, %s124
  $region4: #{residual_forward.7} parent=0 // loop_header_branch
    %13 = sbr.rel (%p11) target = $region8
  $region5: #{residual_forward.7} parent=0 // loop_body
    %s15 = ssub.s32 %s10, 1
    %s16 = ssub.s32 %s10, 2
    %s26 = sadd.s32 1, %s19
    %p27 = scmp.ge.s32.totalorder %s26, 3
    %s28 = scalar_select %p27, 0, %s26
    %s29 = sadd.s32 1, %s18
    %s30 = scalar_select %p27, %s29, %s18
    %p31 = scmp.ge.s32.totalorder %s30, 8
    %s32 = scalar_select %p31, 0, %s30
    %s33 = sadd.s32 1, %s17
    %s34 = scalar_select %p31, %s33, %s17
    %p35 = scmp.ge.s32.totalorder %s34, 2
    %s36 = scalar_select %p35, 0, %s34
    %s37 = sadd.s32 %s18, %s19
    %s38 = sadd.s32 %s32, %s28
    %s39 = ssub.s32 %s17, %s36
    %s40 = ssub.s32 %s37, %s38
    %s41 = sor.u32 %s39, %s40
    %p42 = scmp.eq.s32.totalorder %s41, 0
    %s44 = sadd.s32 %s43, 1
    %s45 = scalar_select %p42, %s43, %s44
    %p48 = pneg %p42
    %p49 = scmp.eq.s32.totalorder %s10, 47
    %p50 = por %p48, %p49
    %p51 = scmp.ne.s32.totalorder %s43, %s46
    %p52 = scmp.eq.s32.totalorder %s10, 0
    %p53 = por %p51, %p52
    %p54 = scmp.ne.s32.totalorder %s43, %s46
    %p55 = scmp.eq.s32.totalorder %s15, 47
    %p56 = por %p54, %p55
    %p57 = scmp.ne.s32.totalorder %s46, %s47
    %p58 = scmp.eq.s32.totalorder %s15, 0
    %p59 = por %p57, %p58
    %p60 = scmp.ne.s32.totalorder %s46, %s47
    %p61 = scmp.eq.s32.totalorder %s16, 47
    %p62 = por %p60, %p61
    %p64 = scmp.ne.s32.totalorder %s47, %s63
    %p65 = scmp.eq.s32.totalorder %s16, 0
    %p66 = por %p64, %p65
    %s68 = sadd.s32 %s67, 1
    %p71 = scmp.eq.s32.totalorder %s10, 47
    %p72 = scmp.ne.s32.totalorder %s67, %s69
    %p73 = scmp.eq.s32.totalorder %s10, 0
    %p74 = por %p72, %p73
    %p75 = scmp.ne.s32.totalorder %s67, %s69
    %p76 = scmp.eq.s32.totalorder %s15, 47
    %p77 = por %p75, %p76
    %p78 = scmp.ne.s32.totalorder %s69, %s70
    %p79 = scmp.eq.s32.totalorder %s15, 0
    %p80 = por %p78, %p79
    %p81 = scmp.ne.s32.totalorder %s69, %s70
    %p82 = scmp.eq.s32.totalorder %s16, 47
    %p83 = por %p81, %p82
    %p85 = scmp.ne.s32.totalorder %s70, %s84
    %p86 = scmp.eq.s32.totalorder %s16, 0
    %p87 = por %p85, %p86
    %s88 = ssub.s32 %s17, %s36
    %s89 = ssub.s32 %s18, %s32
    %s90 = sor.u32 %s88, %s89
    %p91 = scmp.eq.s32.totalorder %s90, 0
    %s93 = sadd.s32 %s92, 1
    %s94 = scalar_select %p91, %s92, %s93
    %p97 = pneg %p91
    %p98 = scmp.eq.s32.totalorder %s10, 47
    %p99 = por %p97, %p98
    %p100 = scmp.ne.s32.totalorder %s92, %s95
    %p101 = scmp.eq.s32.totalorder %s10, 0
    %p102 = por %p100, %p101
    %p103 = scmp.ne.s32.totalorder %s92, %s95
    %p104 = scmp.eq.s32.totalorder %s15, 47
    %p105 = por %p103, %p104
    %p106 = scmp.ne.s32.totalorder %s95, %s96
    %p107 = scmp.eq.s32.totalorder %s15, 0
    %p108 = por %p106, %p107
    %p109 = scmp.ne.s32.totalorder %s95, %s96
    %p110 = scmp.eq.s32.totalorder %s16, 47
    %p111 = por %p109, %p110
    %p113 = scmp.ne.s32.totalorder %s96, %s112
    %p114 = scmp.eq.s32.totalorder %s16, 0
    %p115 = por %p113, %p114
    %s116 = ssub.s32 %s17, %s36
    %s117 = ssub.s32 %s18, %s32
    %s118 = sor.u32 %s116, %s117
    %p119 = scmp.eq.s32.totalorder %s118, 0
    %s121 = sadd.s32 %s120, 1
    %s122 = scalar_select %p119, %s120, %s121
    %p125 = pneg %p119
    %p126 = scmp.eq.s32.totalorder %s10, 47
    %p127 = por %p125, %p126
    %p128 = scmp.ne.s32.totalorder %s120, %s123
    %p129 = scmp.eq.s32.totalorder %s10, 0
    %p130 = por %p128, %p129
    %p131 = scmp.ne.s32.totalorder %s120, %s123
    %p132 = scmp.eq.s32.totalorder %s15, 47
    %p133 = por %p131, %p132
    %p134 = scmp.ne.s32.totalorder %s123, %s124
    %p135 = scmp.eq.s32.totalorder %s15, 0
    %p136 = por %p134, %p135
    %p137 = scmp.ne.s32.totalorder %s123, %s124
    %p138 = scmp.eq.s32.totalorder %s16, 47
    %p139 = por %p137, %p138
    %p141 = scmp.ne.s32.totalorder %s124, %s140
    %p142 = scmp.eq.s32.totalorder %s16, 0
    %p143 = por %p141, %p142
    %p144 = scmp.le.s32.totalorder 1, %s10
    %p145 = scmp.lt.s32.totalorder %s10, 49
    %p146 = pnand %p144, %p145
    %p147 = pneg %p146
    // Predicated region
    $region9: #{residual_forward.7} parent=5 // pred_check
      _
    $region10: #{residual_forward.7} parent=5 // pred_check_branch
      %149 = sbr.rel (%p146) target = $region12
    $region11: #{residual_forward.7} parent=5 // pred_region
      %s150 = ssub.s32 %s10, 1
      // Predicated region
      $region13: #{residual_forward.7} parent=11 // pred_check
        %p151 = pneg %p80
      $region14: #{residual_forward.7} parent=11 // pred_check_branch
        %153 = sbr.rel (%p151) target = $region16
      $region15: #{residual_forward.7} parent=11 // pred_region
        _
      $region16: #{residual_forward.7} parent=11 // pred_fallthru
        _
    $region12: #{residual_forward.7} parent=5 // pred_fallthru
      _
    %p154 = scmp.lt.s32.totalorder %s10, 48
    // Predicated region
    $region17: #{residual_forward.7} parent=5 // pred_check
      %p155 = pneg %p154
    $region18: #{residual_forward.7} parent=5 // pred_check_branch
      %157 = sbr.rel (%p155) target = $region20
    $region19: #{residual_forward.7} parent=5 // pred_region
      // Predicated region
      $region21: #{residual_forward.7} parent=19 // pred_check
        %p158 = pneg %p53
      $region22: #{residual_forward.7} parent=19 // pred_check_branch
        %160 = sbr.rel (%p158) target = $region24
      $region23: #{residual_forward.7} parent=19 // pred_region
        %s161 = sadd.s32 %s18, %s19
        %p162 = scmp.lt.s32.totalorder %s17, 1
        %s163 = scalar_select %p162, %s17, 1
        %p164 = scmp.lt.s32.totalorder %s161, 9
        %s165 = scalar_select %p164, %s161, 9
        %s166 = smul.addr %s165, 2
        %s167 = smul.addr %s163, 20
        %s168 = sadd.s32 %s166, %s167
        %s169 = smul.addr %s168, 4
        %s170 = scalar_lea.vmem %s0, %s169
        %s171 = sadd.s32 %s18, %s19
      $region24: #{residual_forward.7} parent=19 // pred_fallthru
        _
    $region20: #{residual_forward.7} parent=5 // pred_fallthru
      _
    %p172 = scmp.le.s32.totalorder 1, %s10
    %p173 = scmp.lt.s32.totalorder %s10, 49
    %p174 = pnand %p172, %p173
    %p175 = pneg %p174
    // Predicated region
    $region25: #{residual_forward.7} parent=5 // pred_check
      _
    $region26: #{residual_forward.7} parent=5 // pred_check_branch
      %177 = sbr.rel (%p174) target = $region28
    $region27: #{residual_forward.7} parent=5 // pred_region
      %s178 = ssub.s32 %s10, 1
      %s179 = sadd.s32 %s21, %s22
      %p180 = scmp.lt.s32.totalorder %s20, 1
      %s181 = scalar_select %p180, %s20, 1
      %p182 = scmp.lt.s32.totalorder %s179, 9
      %s183 = scalar_select %p182, %s179, 9
      %s184 = smul.addr %s183, 2
      %s185 = smul.addr %s181, 20
      %s186 = sadd.s32 %s184, %s185
      %s187 = smul.addr %s186, 4
      %s188 = scalar_lea.vmem %s0, %s187
      %p189 = pneg %p59
      %p190 = pneg %p56
      %p191 = pneg %p80
      %p192 = pneg %p77
      %p193 = pneg %p108
      %p194 = pneg %p105
      %p195 = scmp.lt.s32.totalorder %s20, 1
      %s196 = scalar_select %p195, %s20, 1
      %p197 = scmp.lt.s32.totalorder %s21, 7
      %s198 = scalar_select %p197, %s21, 7
      %s199 = smul.addr %s196, 8
      %s200 = sadd.s32 %s198, %s199
      %s201 = smul.addr %s200, 8
      %s202 = scalar_lea.vmem %s2, %s201
      %p203 = pneg %p136
      %p204 = pneg %p133
      %p205 = scmp.lt.s32.totalorder %s20, 1
      %s206 = scalar_select %p205, %s20, 1
      %p207 = scmp.lt.s32.totalorder %s21, 7
      %s208 = scalar_select %p207, %s21, 7
      %s209 = smul.addr %s206, 8
      %s210 = sadd.s32 %s208, %s209
      %s211 = smul.addr %s210, 2
      %s212 = scalar_lea.vmem %s3, %s211
      %s213 = sadd.s32 %s21, %s22
      %p214 = scmp.lt.s32.totalorder %s20, 1
      %s215 = scalar_select %p214, %s20, 1
      %p216 = scmp.lt.s32.totalorder %s213, 9
      %s217 = scalar_select %p216, %s213, 9
      %s218 = smul.addr %s217, 2
      %s219 = smul.addr %s215, 20
      %s220 = sadd.s32 %s218, %s219
      %s221 = smul.addr %s220, 4
      %s222 = scalar_lea.vmem %s0, %s221
      %s223 = sadd.s32 %s21, %s22
      %p224 = scmp.lt.s32.totalorder %s20, 1
      %s225 = scalar_select %p224, %s20, 1
      %p226 = scmp.lt.s32.totalorder %s21, 7
      %s227 = scalar_select %p226, %s21, 7
      %s228 = smul.addr %s225, 8
      %s229 = sadd.s32 %s227, %s228
      %s230 = smul.addr %s229, 8
      %s231 = scalar_lea.vmem %s2, %s230
      %p232 = scmp.lt.s32.totalorder %s20, 1
      %s233 = scalar_select %p232, %s20, 1
      %p234 = scmp.lt.s32.totalorder %s21, 7
      %s235 = scalar_select %p234, %s21, 7
      %s236 = smul.addr %s233, 8
      %s237 = sadd.s32 %s235, %s236
      %s238 = smul.addr %s237, 2
      %s239 = scalar_lea.vmem %s3, %s238
      %p241 = scmp.eq.s32.totalorder %s22, 0
      // Predicated region
      $region29: #{residual_forward.7} parent=27 // pred_check
        %p242 = pneg %p241
      $region30: #{residual_forward.7} parent=27 // pred_check_branch
        %244 = sbr.rel (%p242) target = $region32
      $region31: #{residual_forward.7} parent=27 // pred_region
        %vm245 = vcmask 64512
        %246 = vst.msk [vmem:[%s231] sm:$0xff] %vm245, 0.0
      $region32: #{residual_forward.7} parent=27 // pred_fallthru
        _
      %s247 = smul.u32 %s22, 3
      %s248 = smul.addr %s247, 4
      %s249 = scalar_lea.vmem %s1, %s248
      %v250 = vld [vmem:[%s249] sm:$0xf]
      %v251 = vld [vmem:[%s249 + $0x4] sm:$0xf]
      %v252 = vld [vmem:[%s249 + $0x8] sm:$0xf]
      %v253 = vld [vmem:[%s222] sm:$0xf]
      %v254 = vld [vmem:[%s222 + $0x4] sm:$0x1]
      %v257 = vunpack.c.l.b16 %v253
      %v258 = vunpack.c.l.b16 %v254
      %v259 = vpack.c.b16 %v258, %v257
      %v261 = vshrl.u32 %v259, 16
      %v263 = vshll.u32 %v259, 16
      %v265 = vrot.slane %v263, 1
      %v266 = vor.u32 %v261, %v265
      %vm267 = vcmask 64512
      %v269 = vsel %vm267, %v266, 0
      %vm271 = vcmask 1043456
      %v273 = vsel %vm271, %v251, 0
      %275 = vmatpush.bf16.msra.mxu0 0
      %276 = vmatpush.bf16.msra.mxu0 0
      %277 = vmatpush.bf16.msra.mxu0 0
      %278 = vmatpush.bf16.msra.mxu0 0
      %279 = vmatpush.bf16.msra.mxu0 0
      %280 = vmatpush.bf16.msra.mxu0 0
      %281 = vmatpush.bf16.msra.mxu0 0
      %282 = vmatpush.bf16.msra.mxu0 %v273
      %283 = vmatmul.bf16.gmra.mxu0 %v269
      %v284 = vpop.f32.mrf.mxu0
      %v285 = vadd.f32 0.0, %v284
      %v286 = vpop.f32.mrf.mxu0
      %287 = vdwg.mxu0
      %v289 = vsel %vm267, %v253, 0
      %v292 = vsel %vm271, %v250, 0
      %294 = vmatpush.bf16.msra.mxu0 0
      %295 = vmatpush.bf16.msra.mxu0 0
      %296 = vmatpush.bf16.msra.mxu0 0
      %297 = vmatpush.bf16.msra.mxu0 0
      %298 = vmatpush.bf16.msra.mxu0 0
      %299 = vmatpush.bf16.msra.mxu0 0
      %300 = vmatpush.bf16.msra.mxu0 0
      %301 = vmatpush.bf16.msra.mxu0 %v292
      %302 = vmatmul.bf16.gmra.mxu0 %v289
      %v303 = vpop.f32.mrf.mxu0
      %v304 = vadd.f32 %v285, %v303
      %v305 = vpop.f32.mrf.mxu0
      %306 = vdwg.mxu0
      %v307 = vld [vmem:[%s222] sm:$0xe]
      %v309 = vunpack.c.l.b16 %v307
      %v310 = vpack.c.b16 %v258, %v309
      %v311 = vrot.slane %v310, 1
      %v313 = vsel %vm267, %v311, 0
      %v316 = vsel %vm271, %v252, 0
      %318 = vmatpush.bf16.msra.mxu0 0
      %319 = vmatpush.bf16.msra.mxu0 0
      %320 = vmatpush.bf16.msra.mxu0 0
      %321 = vmatpush.bf16.msra.mxu0 0
      %322 = vmatpush.bf16.msra.mxu0 0
      %323 = vmatpush.bf16.msra.mxu0 0
      %324 = vmatpush.bf16.msra.mxu0 0
      %325 = vmatpush.bf16.msra.mxu0 %v316
      %326 = vmatmul.bf16.gmra.mxu0 %v313
      %v327 = vpop.f32.mrf.mxu0
      %v328 = vadd.f32 0.0, %v327
      %v329 = vpop.f32.mrf.mxu0
      %330 = vdwg.mxu0
      %v331 = vadd.f32 %v304, %v328
      %v332 = vld [vmem:[%s231] sm:$0xff]
      %v333 = vadd.f32 %v332, %v331
      %334 = vst.msk [vmem:[%s231] sm:$0xff] %vm267, %v333
      %p335 = scmp.eq.s32.totalorder %s22, 2
      // Predicated region
      $region33: #{residual_forward.7} parent=27 // pred_check
        %p336 = pneg %p335
      $region34: #{residual_forward.7} parent=27 // pred_check_branch
        %338 = sbr.rel (%p336) target = $region36
      $region35: #{residual_forward.7} parent=27 // pred_region
        %v339 = vld [vmem:[%s231] sm:$0xff]
        %v340 = vsel %vm267, %v339, 0.0
        %v341 = vrot.slane %v340, 4
        %v342 = vadd.f32 %v340, %v341
        %v343 = vrot.slane %v342, 2
        %v344 = vadd.f32 %v342, %v343
        %v345 = vrot.slane %v344, 1
        %v346 = vadd.f32 %v344, %v345
        %v347 = vmul.f32 %v339, %v339
        %v348 = vsel %vm267, %v347, 0.0
        %v349 = vrot.slane %v348, 4
        %v350 = vadd.f32 %v348, %v349
        %v351 = vrot.slane %v350, 2
        %v352 = vadd.f32 %v350, %v351
        %v353 = vrot.slane %v352, 1
        %v354 = vadd.f32 %v352, %v353
        %vm355 = vcmask 1040384
        %v356 = vsel %vm355, %v346, %v354
        %vm357 = vcmask 58368
        %358 = vst.msk [vmem:[%s239] sm:$0x3] %vm357, %v356
      $region36: #{residual_forward.7} parent=27 // pred_fallthru
        _
      %p359 = scmp.lt.s32.totalorder %s20, 1
      %s360 = scalar_select %p359, %s20, 1
      %p361 = scmp.lt.s32.totalorder %s21, 7
      %s362 = scalar_select %p361, %s21, 7
      %s363 = smul.addr %s360, 8
      %s364 = sadd.s32 %s362, %s363
      %s365 = smul.addr %s364, 8
      %s366 = scalar_lea.vmem %s2, %s365
      %p367 = scmp.lt.s32.totalorder %s20, 1
      %s368 = scalar_select %p367, %s20, 1
      %p369 = scmp.lt.s32.totalorder %s21, 7
      %s370 = scalar_select %p369, %s21, 7
      %s371 = smul.addr %s368, 8
      %s372 = sadd.s32 %s370, %s371
      %s373 = smul.addr %s372, 2
      %s374 = scalar_lea.vmem %s3, %s373
      // Predicated region
      $region37: #{residual_forward.7} parent=27 // pred_check
        %p375 = pneg %p105
      $region38: #{residual_forward.7} parent=27 // pred_check_branch
        %377 = sbr.rel (%p375) target = $region40
      $region39: #{residual_forward.7} parent=27 // pred_region
        _
      $region40: #{residual_forward.7} parent=27 // pred_fallthru
        _
      // Predicated region
      $region41: #{residual_forward.7} parent=27 // pred_check
        %p378 = pneg %p133
      $region42: #{residual_forward.7} parent=27 // pred_check_branch
        %380 = sbr.rel (%p378) target = $region44
      $region43: #{residual_forward.7} parent=27 // pred_region
        _
      $region44: #{residual_forward.7} parent=27 // pred_fallthru
        _
    $region28: #{residual_forward.7} parent=5 // pred_fallthru
      _
    %p381 = scmp.le.s32.totalorder 2, %s10
    // Predicated region
    $region45: #{residual_forward.7} parent=5 // pred_check
      %p382 = pneg %p381
    $region46: #{residual_forward.7} parent=5 // pred_check_branch
      %384 = sbr.rel (%p382) target = $region48
    $region47: #{residual_forward.7} parent=5 // pred_region
      %s385 = ssub.s32 %s10, 2
      // Predicated region
      $region49: #{residual_forward.7} parent=47 // pred_check
        %p386 = pneg %p111
      $region50: #{residual_forward.7} parent=47 // pred_check_branch
        %388 = sbr.rel (%p386) target = $region52
      $region51: #{residual_forward.7} parent=47 // pred_region
        %p389 = scmp.lt.s32.totalorder %s23, 1
        %s390 = scalar_select %p389, %s23, 1
        %p391 = scmp.lt.s32.totalorder %s24, 7
        %s392 = scalar_select %p391, %s24, 7
        %s393 = smul.addr %s390, 8
        %s394 = sadd.s32 %s392, %s393
        %s395 = smul.addr %s394, 8
        %s396 = scalar_lea.vmem %s2, %s395
      $region52: #{residual_forward.7} parent=47 // pred_fallthru
        _
      // Predicated region
      $region53: #{residual_forward.7} parent=47 // pred_check
        %p397 = pneg %p139
      $region54: #{residual_forward.7} parent=47 // pred_check_branch
        %399 = sbr.rel (%p397) target = $region56
      $region55: #{residual_forward.7} parent=47 // pred_region
        %p400 = scmp.lt.s32.totalorder %s23, 1
        %s401 = scalar_select %p400, %s23, 1
        %p402 = scmp.lt.s32.totalorder %s24, 7
        %s403 = scalar_select %p402, %s24, 7
        %s404 = smul.addr %s401, 8
        %s405 = sadd.s32 %s403, %s404
        %s406 = smul.addr %s405, 2
        %s407 = scalar_lea.vmem %s3, %s406
      $region56: #{residual_forward.7} parent=47 // pred_fallthru
        _
    $region48: #{residual_forward.7} parent=5 // pred_fallthru
      _
  $region6: #{residual_forward.7} parent=0 // loop_footer
    %s14 = sadd.s32 1, %s10
  $region7: #{residual_forward.7} parent=0 // loop_footer_branch
    %9 = sbr.rel target = $region3
  $region8: #{residual_forward.7} parent=0 // loop_exit
    _

// kernel: residual_forward.9
$region0: #{residual_forward.9}
  #allocation0 [shape = 'u32[]', space=smem, size = 0x4, offset = 0x4, fixed_abs, tag = 'smem constant byte address 0x4 - core index']
  #allocation1 [shape = 'u32[72,128]{1,0:T(1,128)}', space=vmem, size = 0x9000, scoped, tag = 'internal scratch']
  %s0 = inlined_call_operand.vmem [shape: f32[16,64], index: 0, kind: input, shape index: {}]
  %s1 = inlined_call_operand.vmem [shape: f32[16,64], index: 1, kind: input, shape index: {}]
  %s2 = inlined_call_operand.vmem [shape: f32[1,64], index: 2, kind: input, shape index: {}]
  %s3 = inlined_call_operand.vmem [shape: f32[1,64], index: 3, kind: input, shape index: {}]
  %s4 = inlined_call_operand.vmem [shape: f32[16,64], index: 4, kind: output, shape index: {}]
  %s5 = sld [smem:[#allocation0]]
  $region26: #{residual_forward.9} parent=0
    _
  %s7 = ssub.s32 1, %s5
  %s8 = scalar_select 0, %s7, %s5
  // Predicated region
  $region2: #{residual_forward.9} parent=0 // pred_check
    _
  $region3: #{residual_forward.9} parent=0 // pred_check_branch
    %10 = sbr.rel (0) target = $region5
  $region4: #{residual_forward.9} parent=0 // pred_region
    _
  $region5: #{residual_forward.9} parent=0 // pred_fallthru
    _
  // Predicated region
  $region6: #{residual_forward.9} parent=0 // pred_check
    _
  $region7: #{residual_forward.9} parent=0 // pred_check_branch
    %12 = sbr.rel (0) target = $region9
  $region8: #{residual_forward.9} parent=0 // pred_region
    _
  $region9: #{residual_forward.9} parent=0 // pred_fallthru
    _
  // Predicated region
  $region10: #{residual_forward.9} parent=0 // pred_check
    _
  $region11: #{residual_forward.9} parent=0 // pred_check_branch
    %14 = sbr.rel (0) target = $region13
  $region12: #{residual_forward.9} parent=0 // pred_region
    _
  $region13: #{residual_forward.9} parent=0 // pred_fallthru
    _
  // Predicated region
  $region14: #{residual_forward.9} parent=0 // pred_check
    _
  $region15: #{residual_forward.9} parent=0 // pred_check_branch
    %16 = sbr.rel (0) target = $region17
  $region16: #{residual_forward.9} parent=0 // pred_region
    _
  $region17: #{residual_forward.9} parent=0 // pred_fallthru
    _
  %v17 = vld [vmem:[%s0] sm:$0xff]
  %v18 = vld [vmem:[%s0 + $0x8] sm:$0xff]
  %v19 = vld [vmem:[%s2] sm:$0x1]
  %v21 = vperm.slane %v19, 0
  %v23 = vmul.f32 %v17, %v21
  %v24 = vmul.f32 %v18, %v21
  %v25 = vld [vmem:[%s3] sm:$0x1]
  %v27 = vperm.slane %v25, 0
  %v29 = vadd.f32 %v23, %v27
  %v30 = vadd.f32 %v24, %v27
  %v31 = vld [vmem:[%s1] sm:$0xff]
  %v32 = vld [vmem:[%s1 + $0x8] sm:$0xff]
  %v33 = vadd.f32 %v29, %v31
  %v34 = vadd.f32 %v30, %v32
  %v35 = vmax.f32 %v33, 0.0
  %v36 = vmax.f32 %v34, 0.0
  %vm37 = vcmask 523264
  %38 = vst.msk [vmem:[%s4] sm:$0xff] %vm37, %v35
  %39 = vst.msk [vmem:[%s4 + $0x8] sm:$0xff] %vm37, %v36
  // Predicated region
  $region18: #{residual_forward.9} parent=0 // pred_check
    _
  $region19: #{residual_forward.9} parent=0 // pred_check_branch
    %41 = sbr.rel (0) target = $region21
  $region20: #{residual_forward.9} parent=0 // pred_region
    _
  $region21: #{residual_forward.9} parent=0 // pred_fallthru
    _
  // Predicated region
  $region22: #{residual_forward.9} parent=0 // pred_check
    _
  $region23: #{residual_forward.9} parent=0 // pred_check_branch
    %43 = sbr.rel (0) target = $region25
  $region24: #{residual_forward.9} parent=0 // pred_region
    _
  $region25: #{residual_forward.9} parent=0 // pred_fallthru
    _

</llo_original>
